<compile_context>
chip_gen: v6e
topology: v6e:2x2x1
jax: 0.10.0
libtpu: 0.0.40
codegen_flags: <defaults>
</compile_context>

<pallas_src>
import functools

import jax
import jax.numpy as jnp
from jax.experimental import pallas as pl
from jax.experimental.pallas import tpu as pltpu

_SUBLANE = 8   # f32 sublane count
_LANE = 128    # vreg lane count


# ----------------------- fused LSTM + heads kernel --------------------------
def _encoder_kernel(T, Bp,
                    x_ref, wih_ref, whh_ref, blstm_ref,
                    w1_ref, b1_ref, w2_ref, b2_ref,
                    out_ref, hid_scr):
    """Single-invocation fused encoder kernel.

    x_ref   : (T*Bp, D)    time-major flattened embeddings (batch padded to Bp)
    wih/whh : (D,4H)/(H,4H) LSTM weights (pre-transposed; PyTorch gate order i,f,g,o)
    blstm   : (1, 4H)       combined LSTM bias (b_ih + b_hh)
    w1/b1   : (H, ZM+ZS) / (1, ZM+ZS)      merged head layer-1  [mean | std]
    w2/b2   : (ZM+ZS, OUTP) / (1, OUTP)    block-diagonal head layer-2, lane-padded
    out_ref : (T*Bp, OUTP)  [:, :L] = mean, [:, L:2L] = std, rest zero padding
    hid_scr : (T*Bp, H)     VMEM scratch for the LSTM hidden slab (never in HBM)
    """
    H = whh_ref.shape[0]
    whh = whh_ref[...]

    # Hoisted input projection: one big matmul instead of T tiny ones on the
    # serial critical path.
    gx = (jnp.dot(x_ref[...], wih_ref[...], preferred_element_type=jnp.float32)
          + blstm_ref[...])                                    # (T*Bp, 4H)

    h = jnp.zeros((Bp, H), jnp.float32)
    c = jnp.zeros((Bp, H), jnp.float32)

    # T is tiny & static -> fully unrolled; all slice offsets are static.
    for t in range(T):
        gates = gx[t * Bp:(t + 1) * Bp, :] + jnp.dot(
            h, whh, preferred_element_type=jnp.float32)        # (Bp, 4H)
        i = jax.nn.sigmoid(gates[:, 0:H])
        f = jax.nn.sigmoid(gates[:, H:2 * H])
        g = jnp.tanh(gates[:, 2 * H:3 * H])
        o = jax.nn.sigmoid(gates[:, 3 * H:4 * H])
        c = f * c + i * g
        h = o * jnp.tanh(c)
        hid_scr[pl.ds(t * Bp, Bp), :] = h                      # sublane-aligned

    # Merged mean/std heads on the whole (T*Bp, H) hidden slab.
    hidden = hid_scr[...]
    h1 = jnp.maximum(
        jnp.dot(hidden, w1_ref[...], preferred_element_type=jnp.float32)
        + b1_ref[...], 0.0)
    # Lane-dense (128-wide) unmasked store.
    out_ref[...] = (
        jnp.dot(h1, w2_ref[...], preferred_element_type=jnp.float32)
        + b2_ref[...])


# ------------------------------ full forward --------------------------------
def encoder_forward(params, usr, loc, tim, pos):
    B, T = loc.shape
    H = params["whh"].shape[0]
    ZM = params["w1m"].shape[1]
    ZS = params["w1s"].shape[1]
    L = params["w2m"].shape[1]
    Bp = ((B + _SUBLANE - 1) // _SUBLANE) * _SUBLANE        # pad batch to sublane mult
    OUTP = max(_LANE, ((2 * L + _LANE - 1) // _LANE) * _LANE)  # lane-dense output

    # Embedding lookups (tiny gathers) in XLA, gathered directly in time-major
    # (T, B, E) layout so the big activation tensor is never transposed.
    # TODO(synk): gather could be fused in-kernel via scalar prefetch, but in-kernel
    # dynamic gather lowering is not robust; kept in XLA.
    locT, timT, usrT, posT = loc.T, tim.T, usr.T, pos.T        # (T, B) int32
    x_emb = jnp.concatenate(
        (jnp.take(params["emb_loc"], locT, axis=0),
         jnp.take(params["emb_poi"], locT, axis=0),
         jnp.take(params["emb_tim"], timT, axis=0),
         jnp.take(params["emb_usr"], usrT, axis=0),
         jnp.take(params["emb_pos"], posT, axis=0)), axis=-1)  # (T, B, D)
    # dropout: identity at inference (eval mode)
    D = x_emb.shape[-1]
    x_pad = jnp.pad(x_emb, ((0, 0), (0, Bp - B), (0, 0)))      # (T, Bp, D)
    x_flat = x_pad.reshape(T * Bp, D)

    # Merge the two heads (constant-folded under jit; params are closure consts).
    w1cat = jnp.concatenate((params["w1m"], params["w1s"]), axis=1)   # (H, ZM+ZS)
    b1cat = jnp.concatenate((params["b1m"], params["b1s"]), axis=1)   # (1, ZM+ZS)
    w2big = jnp.zeros((ZM + ZS, OUTP), jnp.float32)
    w2big = w2big.at[:ZM, :L].set(params["w2m"])
    w2big = w2big.at[ZM:, L:2 * L].set(params["w2s"])                 # (ZM+ZS, OUTP)
    b2cat = jnp.zeros((1, OUTP), jnp.float32)
    b2cat = b2cat.at[:, :L].set(params["b2m"])
    b2cat = b2cat.at[:, L:2 * L].set(params["b2s"])                   # (1, OUTP)

    out = pl.pallas_call(
        functools.partial(_encoder_kernel, T, Bp),
        out_shape=jax.ShapeDtypeStruct((T * Bp, OUTP), jnp.float32),
        scratch_shapes=[pltpu.VMEM((T * Bp, H), jnp.float32)],
    )(x_flat, params["wih"], params["whh"], params["b_lstm"],
      w1cat, b1cat, w2big, b2cat)

    out = out.reshape(T, Bp, OUTP)[:, :B, :2 * L]   # drop padded rows & lanes
    out = jnp.transpose(out, (1, 0, 2))             # (B, T, 2L) — tiny
    return out[..., :L], out[..., L:]


# --------------------------- pure-JAX reference ------------------------------
def encoder_reference(params, usr, loc, tim, pos):
    loc_emb = jnp.take(params["emb_loc"], loc, axis=0)
    poi_emb = jnp.take(params["emb_poi"], loc, axis=0)
    tim_emb = jnp.take(params["emb_tim"], tim, axis=0)
    usr_emb = jnp.take(params["emb_usr"], usr, axis=0)
    pos_emb = jnp.take(params["emb_pos"], pos, axis=0)
    x_emb = jnp.concatenate((loc_emb, poi_emb, tim_emb, usr_emb, pos_emb), -1)

    B, T, D = x_emb.shape
    H = params["whh"].shape[0]

    def step(carry, x_t):
        h, c = carry
        gates = x_t @ params["wih"] + h @ params["whh"] + params["b_lstm"][0]
        i = jax.nn.sigmoid(gates[:, 0:H])
        f = jax.nn.sigmoid(gates[:, H:2 * H])
        g = jnp.tanh(gates[:, 2 * H:3 * H])
        o = jax.nn.sigmoid(gates[:, 3 * H:4 * H])
        c = f * c + i * g
        h = o * jnp.tanh(c)
        return (h, c), h

    h0 = jnp.zeros((B, H), jnp.float32)
    c0 = jnp.zeros((B, H), jnp.float32)
    (_, _), hs = jax.lax.scan(step, (h0, c0), jnp.transpose(x_emb, (1, 0, 2)))
    hidden = jnp.transpose(hs, (1, 0, 2))

    hm = jnp.maximum(hidden @ params["w1m"] + params["b1m"][0], 0.0)
    mean = hm @ params["w2m"] + params["b2m"][0]
    hs_ = jnp.maximum(hidden @ params["w1s"] + params["b1s"][0], 0.0)
    std = hs_ @ params["w2s"] + params["b2s"][0]
    return mean, std


# --------------------------------- main --------------------------------------
if __name__ == "__main__":
    # sizes
    B, T = 2, 8
    LOC_VOCAB, TIM_VOCAB, USR_VOCAB, POS_VOCAB = 50, 24, 10, 16
    LOC_E, POI_E, TIM_E, USR_E, POS_E = 16, 16, 8, 8, 16
    D_IN = LOC_E + POI_E + TIM_E + USR_E + POS_E          # 64
    H = 32                                                # encoder_rnn_hidden_size
    ZM, ZS, LAT = 32, 32, 16

    key = jax.random.PRNGKey(0)
    ks = jax.random.split(key, 20)

    def nrm(k, shape, scale=0.1):
        return jax.random.normal(k, shape, jnp.float32) * scale

    params = {
        "emb_loc": nrm(ks[0], (LOC_VOCAB, LOC_E)),
        "emb_poi": nrm(ks[1], (LOC_VOCAB, POI_E)),
        "emb_tim": nrm(ks[2], (TIM_VOCAB, TIM_E)),
        "emb_usr": nrm(ks[3], (USR_VOCAB, USR_E)),
        "emb_pos": nrm(ks[4], (POS_VOCAB, POS_E)),
        # LSTM weights stored pre-transposed: x @ wih, h @ whh; bias = b_ih+b_hh
        "wih": nrm(ks[5], (D_IN, 4 * H)),
        "whh": nrm(ks[6], (H, 4 * H)),
        "b_lstm": nrm(ks[7], (1, 4 * H)),
        # mean head (weights stored as (in, out))
        "w1m": nrm(ks[8], (H, ZM)),
        "b1m": nrm(ks[9], (1, ZM)),
        "w2m": nrm(ks[10], (ZM, LAT)),
        "b2m": nrm(ks[11], (1, LAT)),
        # std head
        "w1s": nrm(ks[12], (H, ZS)),
        "b1s": nrm(ks[13], (1, ZS)),
        "w2s": nrm(ks[14], (ZS, LAT)),
        "b2s": nrm(ks[15], (1, LAT)),
    }

    usr = jax.random.randint(ks[16], (B, T), 0, USR_VOCAB, jnp.int32)
    loc = jax.random.randint(ks[17], (B, T), 0, LOC_VOCAB, jnp.int32)
    tim = jax.random.randint(ks[18], (B, T), 0, TIM_VOCAB, jnp.int32)
    pos = jnp.broadcast_to(jnp.arange(T, dtype=jnp.int32), (B, T))

    mean, std = jax.jit(functools.partial(encoder_forward, params))(
        usr, loc, tim, pos)
    jax.block_until_ready((mean, std))

    mean_ref, std_ref = encoder_reference(params, usr, loc, tim, pos)
    assert mean.shape == (B, T, LAT) and std.shape == (B, T, LAT)
    assert jnp.allclose(mean, mean_ref, atol=1e-5, rtol=1e-5)
    assert jnp.allclose(std, std_ref, atol=1e-5, rtol=1e-5)

    print("KERNEL_OK")
</pallas_src>

<mosaic_0001>
module attributes {stable_mosaic.version = 11 : i64} {
  func.func @_encoder_kernel(%arg0: memref<64x64xf32, #tpu.memory_space<vmem>>, %arg1: memref<64x128xf32, #tpu.memory_space<vmem>>, %arg2: memref<32x128xf32, #tpu.memory_space<vmem>>, %arg3: memref<1x128xf32, #tpu.memory_space<vmem>>, %arg4: memref<32x64xf32, #tpu.memory_space<vmem>>, %arg5: memref<1x64xf32, #tpu.memory_space<vmem>>, %arg6: memref<64x128xf32, #tpu.memory_space<vmem>>, %arg7: memref<1x128xf32, #tpu.memory_space<vmem>>, %arg8: memref<64x128xf32, #tpu.memory_space<vmem>>, %arg9: memref<64x32xf32, #tpu.memory_space<vmem>>) attributes {dimension_semantics = [], scalar_prefetch = 0 : i64, scratch_operands = 1 : i64, tpu.core_type = #tpu.core_type<tc>} {
    %c0 = arith.constant 0 : index
    %c0_0 = arith.constant 0 : index
    %0 = vector.load %arg2[%c0, %c0_0] : memref<32x128xf32, #tpu.memory_space<vmem>>, vector<32x128xf32>
    %c0_1 = arith.constant 0 : index
    %c0_2 = arith.constant 0 : index
    %1 = vector.load %arg0[%c0_1, %c0_2] : memref<64x64xf32, #tpu.memory_space<vmem>>, vector<64x64xf32>
    %c0_3 = arith.constant 0 : index
    %c0_4 = arith.constant 0 : index
    %2 = vector.load %arg1[%c0_3, %c0_4] : memref<64x128xf32, #tpu.memory_space<vmem>>, vector<64x128xf32>
    %cst = arith.constant dense<0.000000e+00> : vector<64x128xf32>
    %3 = tpu.matmul %1, %2, %cst {dimension_numbers = #tpu.dot_dimension_numbers<[1], [0], [0], [1], [0, 0, 1, 1], [], []>} : vector<64x64xf32>, vector<64x128xf32>, vector<64x128xf32> -> vector<64x128xf32>
    %c0_5 = arith.constant 0 : index
    %c0_6 = arith.constant 0 : index
    %4 = vector.load %arg3[%c0_5, %c0_6] : memref<1x128xf32, #tpu.memory_space<vmem>>, vector<1x128xf32>
    %5 = vector.broadcast %4 : vector<1x128xf32> to vector<64x128xf32>
    %6 = arith.addf %3, %5 : vector<64x128xf32>
    %cst_7 = arith.constant 0.000000e+00 : f32
    %7 = vector.broadcast %cst_7 : f32 to vector<8x32xf32>
    %cst_8 = arith.constant 0.000000e+00 : f32
    %8 = vector.broadcast %cst_8 : f32 to vector<8x32xf32>
    %9 = vector.extract_strided_slice %6 {offsets = [0, 0], sizes = [8, 128], strides = [1, 1]} : vector<64x128xf32> to vector<8x128xf32>
    %cst_9 = arith.constant dense<0.000000e+00> : vector<8x128xf32>
    %10 = tpu.matmul %7, %0, %cst_9 {dimension_numbers = #tpu.dot_dimension_numbers<[1], [0], [0], [1], [0, 0, 1, 1], [], []>} : vector<8x32xf32>, vector<32x128xf32>, vector<8x128xf32> -> vector<8x128xf32>
    %11 = arith.addf %9, %10 : vector<8x128xf32>
    %12 = vector.extract_strided_slice %11 {offsets = [0, 0], sizes = [8, 32], strides = [1, 1]} : vector<8x128xf32> to vector<8x32xf32>
    %13 = arith.negf %12 : vector<8x32xf32>
    %14 = math.exp %13 : vector<8x32xf32>
    %cst_10 = arith.constant 1.000000e+00 : f32
    %15 = vector.broadcast %cst_10 : f32 to vector<8x32xf32>
    %16 = arith.addf %15, %14 : vector<8x32xf32>
    %17 = arith.divf %15, %16 : vector<8x32xf32>
    %18 = vector.extract_strided_slice %11 {offsets = [0, 32], sizes = [8, 32], strides = [1, 1]} : vector<8x128xf32> to vector<8x32xf32>
    %19 = arith.negf %18 : vector<8x32xf32>
    %20 = math.exp %19 : vector<8x32xf32>
    %cst_11 = arith.constant 1.000000e+00 : f32
    %21 = vector.broadcast %cst_11 : f32 to vector<8x32xf32>
    %22 = arith.addf %21, %20 : vector<8x32xf32>
    %23 = arith.divf %21, %22 : vector<8x32xf32>
    %24 = vector.extract_strided_slice %11 {offsets = [0, 64], sizes = [8, 32], strides = [1, 1]} : vector<8x128xf32> to vector<8x32xf32>
    %25 = math.tanh %24 : vector<8x32xf32>
    %26 = vector.extract_strided_slice %11 {offsets = [0, 96], sizes = [8, 32], strides = [1, 1]} : vector<8x128xf32> to vector<8x32xf32>
    %27 = arith.negf %26 : vector<8x32xf32>
    %28 = math.exp %27 : vector<8x32xf32>
    %cst_12 = arith.constant 1.000000e+00 : f32
    %29 = vector.broadcast %cst_12 : f32 to vector<8x32xf32>
    %30 = arith.addf %29, %28 : vector<8x32xf32>
    %31 = arith.divf %29, %30 : vector<8x32xf32>
    %32 = arith.mulf %23, %8 : vector<8x32xf32>
    %33 = arith.mulf %17, %25 : vector<8x32xf32>
    %34 = arith.addf %32, %33 : vector<8x32xf32>
    %35 = math.tanh %34 : vector<8x32xf32>
    %36 = arith.mulf %31, %35 : vector<8x32xf32>
    %c0_13 = arith.constant 0 : index
    %c0_14 = arith.constant 0 : index
    %37 = vector.load %arg9[%c0_13, %c0_14] : memref<64x32xf32, #tpu.memory_space<vmem>>, vector<8x32xf32>
    tpu.vector_store %arg9[%c0_13, %c0_14], %36 {strides = array<i32>} : memref<64x32xf32, #tpu.memory_space<vmem>>, vector<8x32xf32>,
    %38 = vector.extract_strided_slice %6 {offsets = [8, 0], sizes = [8, 128], strides = [1, 1]} : vector<64x128xf32> to vector<8x128xf32>
    %cst_15 = arith.constant dense<0.000000e+00> : vector<8x128xf32>
    %39 = tpu.matmul %36, %0, %cst_15 {dimension_numbers = #tpu.dot_dimension_numbers<[1], [0], [0], [1], [0, 0, 1, 1], [], []>} : vector<8x32xf32>, vector<32x128xf32>, vector<8x128xf32> -> vector<8x128xf32>
    %40 = arith.addf %38, %39 : vector<8x128xf32>
    %41 = vector.extract_strided_slice %40 {offsets = [0, 0], sizes = [8, 32], strides = [1, 1]} : vector<8x128xf32> to vector<8x32xf32>
    %42 = arith.negf %41 : vector<8x32xf32>
    %43 = math.exp %42 : vector<8x32xf32>
    %cst_16 = arith.constant 1.000000e+00 : f32
    %44 = vector.broadcast %cst_16 : f32 to vector<8x32xf32>
    %45 = arith.addf %44, %43 : vector<8x32xf32>
    %46 = arith.divf %44, %45 : vector<8x32xf32>
    %47 = vector.extract_strided_slice %40 {offsets = [0, 32], sizes = [8, 32], strides = [1, 1]} : vector<8x128xf32> to vector<8x32xf32>
    %48 = arith.negf %47 : vector<8x32xf32>
    %49 = math.exp %48 : vector<8x32xf32>
    %cst_17 = arith.constant 1.000000e+00 : f32
    %50 = vector.broadcast %cst_17 : f32 to vector<8x32xf32>
    %51 = arith.addf %50, %49 : vector<8x32xf32>
    %52 = arith.divf %50, %51 : vector<8x32xf32>
    %53 = vector.extract_strided_slice %40 {offsets = [0, 64], sizes = [8, 32], strides = [1, 1]} : vector<8x128xf32> to vector<8x32xf32>
    %54 = math.tanh %53 : vector<8x32xf32>
    %55 = vector.extract_strided_slice %40 {offsets = [0, 96], sizes = [8, 32], strides = [1, 1]} : vector<8x128xf32> to vector<8x32xf32>
    %56 = arith.negf %55 : vector<8x32xf32>
    %57 = math.exp %56 : vector<8x32xf32>
    %cst_18 = arith.constant 1.000000e+00 : f32
    %58 = vector.broadcast %cst_18 : f32 to vector<8x32xf32>
    %59 = arith.addf %58, %57 : vector<8x32xf32>
    %60 = arith.divf %58, %59 : vector<8x32xf32>
    %61 = arith.mulf %52, %34 : vector<8x32xf32>
    %62 = arith.mulf %46, %54 : vector<8x32xf32>
    %63 = arith.addf %61, %62 : vector<8x32xf32>
    %64 = math.tanh %63 : vector<8x32xf32>
    %65 = arith.mulf %60, %64 : vector<8x32xf32>
    %c8 = arith.constant 8 : index
    %c0_19 = arith.constant 0 : index
    %66 = vector.load %arg9[%c8, %c0_19] : memref<64x32xf32, #tpu.memory_space<vmem>>, vector<8x32xf32>
    tpu.vector_store %arg9[%c8, %c0_19], %65 {strides = array<i32>} : memref<64x32xf32, #tpu.memory_space<vmem>>, vector<8x32xf32>,
    %67 = vector.extract_strided_slice %6 {offsets = [16, 0], sizes = [8, 128], strides = [1, 1]} : vector<64x128xf32> to vector<8x128xf32>
    %cst_20 = arith.constant dense<0.000000e+00> : vector<8x128xf32>
    %68 = tpu.matmul %65, %0, %cst_20 {dimension_numbers = #tpu.dot_dimension_numbers<[1], [0], [0], [1], [0, 0, 1, 1], [], []>} : vector<8x32xf32>, vector<32x128xf32>, vector<8x128xf32> -> vector<8x128xf32>
    %69 = arith.addf %67, %68 : vector<8x128xf32>
    %70 = vector.extract_strided_slice %69 {offsets = [0, 0], sizes = [8, 32], strides = [1, 1]} : vector<8x128xf32> to vector<8x32xf32>
    %71 = arith.negf %70 : vector<8x32xf32>
    %72 = math.exp %71 : vector<8x32xf32>
    %cst_21 = arith.constant 1.000000e+00 : f32
    %73 = vector.broadcast %cst_21 : f32 to vector<8x32xf32>
    %74 = arith.addf %73, %72 : vector<8x32xf32>
    %75 = arith.divf %73, %74 : vector<8x32xf32>
    %76 = vector.extract_strided_slice %69 {offsets = [0, 32], sizes = [8, 32], strides = [1, 1]} : vector<8x128xf32> to vector<8x32xf32>
    %77 = arith.negf %76 : vector<8x32xf32>
    %78 = math.exp %77 : vector<8x32xf32>
    %cst_22 = arith.constant 1.000000e+00 : f32
    %79 = vector.broadcast %cst_22 : f32 to vector<8x32xf32>
    %80 = arith.addf %79, %78 : vector<8x32xf32>
    %81 = arith.divf %79, %80 : vector<8x32xf32>
    %82 = vector.extract_strided_slice %69 {offsets = [0, 64], sizes = [8, 32], strides = [1, 1]} : vector<8x128xf32> to vector<8x32xf32>
    %83 = math.tanh %82 : vector<8x32xf32>
    %84 = vector.extract_strided_slice %69 {offsets = [0, 96], sizes = [8, 32], strides = [1, 1]} : vector<8x128xf32> to vector<8x32xf32>
    %85 = arith.negf %84 : vector<8x32xf32>
    %86 = math.exp %85 : vector<8x32xf32>
    %cst_23 = arith.constant 1.000000e+00 : f32
    %87 = vector.broadcast %cst_23 : f32 to vector<8x32xf32>
    %88 = arith.addf %87, %86 : vector<8x32xf32>
    %89 = arith.divf %87, %88 : vector<8x32xf32>
    %90 = arith.mulf %81, %63 : vector<8x32xf32>
    %91 = arith.mulf %75, %83 : vector<8x32xf32>
    %92 = arith.addf %90, %91 : vector<8x32xf32>
    %93 = math.tanh %92 : vector<8x32xf32>
    %94 = arith.mulf %89, %93 : vector<8x32xf32>
    %c16 = arith.constant 16 : index
    %c0_24 = arith.constant 0 : index
    %95 = vector.load %arg9[%c16, %c0_24] : memref<64x32xf32, #tpu.memory_space<vmem>>, vector<8x32xf32>
    tpu.vector_store %arg9[%c16, %c0_24], %94 {strides = array<i32>} : memref<64x32xf32, #tpu.memory_space<vmem>>, vector<8x32xf32>,
    %96 = vector.extract_strided_slice %6 {offsets = [24, 0], sizes = [8, 128], strides = [1, 1]} : vector<64x128xf32> to vector<8x128xf32>
    %cst_25 = arith.constant dense<0.000000e+00> : vector<8x128xf32>
    %97 = tpu.matmul %94, %0, %cst_25 {dimension_numbers = #tpu.dot_dimension_numbers<[1], [0], [0], [1], [0, 0, 1, 1], [], []>} : vector<8x32xf32>, vector<32x128xf32>, vector<8x128xf32> -> vector<8x128xf32>
    %98 = arith.addf %96, %97 : vector<8x128xf32>
    %99 = vector.extract_strided_slice %98 {offsets = [0, 0], sizes = [8, 32], strides = [1, 1]} : vector<8x128xf32> to vector<8x32xf32>
    %100 = arith.negf %99 : vector<8x32xf32>
    %101 = math.exp %100 : vector<8x32xf32>
    %cst_26 = arith.constant 1.000000e+00 : f32
    %102 = vector.broadcast %cst_26 : f32 to vector<8x32xf32>
    %103 = arith.addf %102, %101 : vector<8x32xf32>
    %104 = arith.divf %102, %103 : vector<8x32xf32>
    %105 = vector.extract_strided_slice %98 {offsets = [0, 32], sizes = [8, 32], strides = [1, 1]} : vector<8x128xf32> to vector<8x32xf32>
    %106 = arith.negf %105 : vector<8x32xf32>
    %107 = math.exp %106 : vector<8x32xf32>
    %cst_27 = arith.constant 1.000000e+00 : f32
    %108 = vector.broadcast %cst_27 : f32 to vector<8x32xf32>
    %109 = arith.addf %108, %107 : vector<8x32xf32>
    %110 = arith.divf %108, %109 : vector<8x32xf32>
    %111 = vector.extract_strided_slice %98 {offsets = [0, 64], sizes = [8, 32], strides = [1, 1]} : vector<8x128xf32> to vector<8x32xf32>
    %112 = math.tanh %111 : vector<8x32xf32>
    %113 = vector.extract_strided_slice %98 {offsets = [0, 96], sizes = [8, 32], strides = [1, 1]} : vector<8x128xf32> to vector<8x32xf32>
    %114 = arith.negf %113 : vector<8x32xf32>
    %115 = math.exp %114 : vector<8x32xf32>
    %cst_28 = arith.constant 1.000000e+00 : f32
    %116 = vector.broadcast %cst_28 : f32 to vector<8x32xf32>
    %117 = arith.addf %116, %115 : vector<8x32xf32>
    %118 = arith.divf %116, %117 : vector<8x32xf32>
    %119 = arith.mulf %110, %92 : vector<8x32xf32>
    %120 = arith.mulf %104, %112 : vector<8x32xf32>
    %121 = arith.addf %119, %120 : vector<8x32xf32>
    %122 = math.tanh %121 : vector<8x32xf32>
    %123 = arith.mulf %118, %122 : vector<8x32xf32>
    %c24 = arith.constant 24 : index
    %c0_29 = arith.constant 0 : index
    %124 = vector.load %arg9[%c24, %c0_29] : memref<64x32xf32, #tpu.memory_space<vmem>>, vector<8x32xf32>
    tpu.vector_store %arg9[%c24, %c0_29], %123 {strides = array<i32>} : memref<64x32xf32, #tpu.memory_space<vmem>>, vector<8x32xf32>,
    %125 = vector.extract_strided_slice %6 {offsets = [32, 0], sizes = [8, 128], strides = [1, 1]} : vector<64x128xf32> to vector<8x128xf32>
    %cst_30 = arith.constant dense<0.000000e+00> : vector<8x128xf32>
    %126 = tpu.matmul %123, %0, %cst_30 {dimension_numbers = #tpu.dot_dimension_numbers<[1], [0], [0], [1], [0, 0, 1, 1], [], []>} : vector<8x32xf32>, vector<32x128xf32>, vector<8x128xf32> -> vector<8x128xf32>
    %127 = arith.addf %125, %126 : vector<8x128xf32>
    %128 = vector.extract_strided_slice %127 {offsets = [0, 0], sizes = [8, 32], strides = [1, 1]} : vector<8x128xf32> to vector<8x32xf32>
    %129 = arith.negf %128 : vector<8x32xf32>
    %130 = math.exp %129 : vector<8x32xf32>
    %cst_31 = arith.constant 1.000000e+00 : f32
    %131 = vector.broadcast %cst_31 : f32 to vector<8x32xf32>
    %132 = arith.addf %131, %130 : vector<8x32xf32>
    %133 = arith.divf %131, %132 : vector<8x32xf32>
    %134 = vector.extract_strided_slice %127 {offsets = [0, 32], sizes = [8, 32], strides = [1, 1]} : vector<8x128xf32> to vector<8x32xf32>
    %135 = arith.negf %134 : vector<8x32xf32>
    %136 = math.exp %135 : vector<8x32xf32>
    %cst_32 = arith.constant 1.000000e+00 : f32
    %137 = vector.broadcast %cst_32 : f32 to vector<8x32xf32>
    %138 = arith.addf %137, %136 : vector<8x32xf32>
    %139 = arith.divf %137, %138 : vector<8x32xf32>
    %140 = vector.extract_strided_slice %127 {offsets = [0, 64], sizes = [8, 32], strides = [1, 1]} : vector<8x128xf32> to vector<8x32xf32>
    %141 = math.tanh %140 : vector<8x32xf32>
    %142 = vector.extract_strided_slice %127 {offsets = [0, 96], sizes = [8, 32], strides = [1, 1]} : vector<8x128xf32> to vector<8x32xf32>
    %143 = arith.negf %142 : vector<8x32xf32>
    %144 = math.exp %143 : vector<8x32xf32>
    %cst_33 = arith.constant 1.000000e+00 : f32
    %145 = vector.broadcast %cst_33 : f32 to vector<8x32xf32>
    %146 = arith.addf %145, %144 : vector<8x32xf32>
    %147 = arith.divf %145, %146 : vector<8x32xf32>
    %148 = arith.mulf %139, %121 : vector<8x32xf32>
    %149 = arith.mulf %133, %141 : vector<8x32xf32>
    %150 = arith.addf %148, %149 : vector<8x32xf32>
    %151 = math.tanh %150 : vector<8x32xf32>
    %152 = arith.mulf %147, %151 : vector<8x32xf32>
    %c32 = arith.constant 32 : index
    %c0_34 = arith.constant 0 : index
    %153 = vector.load %arg9[%c32, %c0_34] : memref<64x32xf32, #tpu.memory_space<vmem>>, vector<8x32xf32>
    tpu.vector_store %arg9[%c32, %c0_34], %152 {strides = array<i32>} : memref<64x32xf32, #tpu.memory_space<vmem>>, vector<8x32xf32>,
    %154 = vector.extract_strided_slice %6 {offsets = [40, 0], sizes = [8, 128], strides = [1, 1]} : vector<64x128xf32> to vector<8x128xf32>
    %cst_35 = arith.constant dense<0.000000e+00> : vector<8x128xf32>
    %155 = tpu.matmul %152, %0, %cst_35 {dimension_numbers = #tpu.dot_dimension_numbers<[1], [0], [0], [1], [0, 0, 1, 1], [], []>} : vector<8x32xf32>, vector<32x128xf32>, vector<8x128xf32> -> vector<8x128xf32>
    %156 = arith.addf %154, %155 : vector<8x128xf32>
    %157 = vector.extract_strided_slice %156 {offsets = [0, 0], sizes = [8, 32], strides = [1, 1]} : vector<8x128xf32> to vector<8x32xf32>
    %158 = arith.negf %157 : vector<8x32xf32>
    %159 = math.exp %158 : vector<8x32xf32>
    %cst_36 = arith.constant 1.000000e+00 : f32
    %160 = vector.broadcast %cst_36 : f32 to vector<8x32xf32>
    %161 = arith.addf %160, %159 : vector<8x32xf32>
    %162 = arith.divf %160, %161 : vector<8x32xf32>
    %163 = vector.extract_strided_slice %156 {offsets = [0, 32], sizes = [8, 32], strides = [1, 1]} : vector<8x128xf32> to vector<8x32xf32>
    %164 = arith.negf %163 : vector<8x32xf32>
    %165 = math.exp %164 : vector<8x32xf32>
    %cst_37 = arith.constant 1.000000e+00 : f32
    %166 = vector.broadcast %cst_37 : f32 to vector<8x32xf32>
    %167 = arith.addf %166, %165 : vector<8x32xf32>
    %168 = arith.divf %166, %167 : vector<8x32xf32>
    %169 = vector.extract_strided_slice %156 {offsets = [0, 64], sizes = [8, 32], strides = [1, 1]} : vector<8x128xf32> to vector<8x32xf32>
    %170 = math.tanh %169 : vector<8x32xf32>
    %171 = vector.extract_strided_slice %156 {offsets = [0, 96], sizes = [8, 32], strides = [1, 1]} : vector<8x128xf32> to vector<8x32xf32>
    %172 = arith.negf %171 : vector<8x32xf32>
    %173 = math.exp %172 : vector<8x32xf32>
    %cst_38 = arith.constant 1.000000e+00 : f32
    %174 = vector.broadcast %cst_38 : f32 to vector<8x32xf32>
    %175 = arith.addf %174, %173 : vector<8x32xf32>
    %176 = arith.divf %174, %175 : vector<8x32xf32>
    %177 = arith.mulf %168, %150 : vector<8x32xf32>
    %178 = arith.mulf %162, %170 : vector<8x32xf32>
    %179 = arith.addf %177, %178 : vector<8x32xf32>
    %180 = math.tanh %179 : vector<8x32xf32>
    %181 = arith.mulf %176, %180 : vector<8x32xf32>
    %c40 = arith.constant 40 : index
    %c0_39 = arith.constant 0 : index
    %182 = vector.load %arg9[%c40, %c0_39] : memref<64x32xf32, #tpu.memory_space<vmem>>, vector<8x32xf32>
    tpu.vector_store %arg9[%c40, %c0_39], %181 {strides = array<i32>} : memref<64x32xf32, #tpu.memory_space<vmem>>, vector<8x32xf32>,
    %183 = vector.extract_strided_slice %6 {offsets = [48, 0], sizes = [8, 128], strides = [1, 1]} : vector<64x128xf32> to vector<8x128xf32>
    %cst_40 = arith.constant dense<0.000000e+00> : vector<8x128xf32>
    %184 = tpu.matmul %181, %0, %cst_40 {dimension_numbers = #tpu.dot_dimension_numbers<[1], [0], [0], [1], [0, 0, 1, 1], [], []>} : vector<8x32xf32>, vector<32x128xf32>, vector<8x128xf32> -> vector<8x128xf32>
    %185 = arith.addf %183, %184 : vector<8x128xf32>
    %186 = vector.extract_strided_slice %185 {offsets = [0, 0], sizes = [8, 32], strides = [1, 1]} : vector<8x128xf32> to vector<8x32xf32>
    %187 = arith.negf %186 : vector<8x32xf32>
    %188 = math.exp %187 : vector<8x32xf32>
    %cst_41 = arith.constant 1.000000e+00 : f32
    %189 = vector.broadcast %cst_41 : f32 to vector<8x32xf32>
    %190 = arith.addf %189, %188 : vector<8x32xf32>
    %191 = arith.divf %189, %190 : vector<8x32xf32>
    %192 = vector.extract_strided_slice %185 {offsets = [0, 32], sizes = [8, 32], strides = [1, 1]} : vector<8x128xf32> to vector<8x32xf32>
    %193 = arith.negf %192 : vector<8x32xf32>
    %194 = math.exp %193 : vector<8x32xf32>
    %cst_42 = arith.constant 1.000000e+00 : f32
    %195 = vector.broadcast %cst_42 : f32 to vector<8x32xf32>
    %196 = arith.addf %195, %194 : vector<8x32xf32>
    %197 = arith.divf %195, %196 : vector<8x32xf32>
    %198 = vector.extract_strided_slice %185 {offsets = [0, 64], sizes = [8, 32], strides = [1, 1]} : vector<8x128xf32> to vector<8x32xf32>
    %199 = math.tanh %198 : vector<8x32xf32>
    %200 = vector.extract_strided_slice %185 {offsets = [0, 96], sizes = [8, 32], strides = [1, 1]} : vector<8x128xf32> to vector<8x32xf32>
    %201 = arith.negf %200 : vector<8x32xf32>
    %202 = math.exp %201 : vector<8x32xf32>
    %cst_43 = arith.constant 1.000000e+00 : f32
    %203 = vector.broadcast %cst_43 : f32 to vector<8x32xf32>
    %204 = arith.addf %203, %202 : vector<8x32xf32>
    %205 = arith.divf %203, %204 : vector<8x32xf32>
    %206 = arith.mulf %197, %179 : vector<8x32xf32>
    %207 = arith.mulf %191, %199 : vector<8x32xf32>
    %208 = arith.addf %206, %207 : vector<8x32xf32>
    %209 = math.tanh %208 : vector<8x32xf32>
    %210 = arith.mulf %205, %209 : vector<8x32xf32>
    %c48 = arith.constant 48 : index
    %c0_44 = arith.constant 0 : index
    %211 = vector.load %arg9[%c48, %c0_44] : memref<64x32xf32, #tpu.memory_space<vmem>>, vector<8x32xf32>
    tpu.vector_store %arg9[%c48, %c0_44], %210 {strides = array<i32>} : memref<64x32xf32, #tpu.memory_space<vmem>>, vector<8x32xf32>,
    %212 = vector.extract_strided_slice %6 {offsets = [56, 0], sizes = [8, 128], strides = [1, 1]} : vector<64x128xf32> to vector<8x128xf32>
    %cst_45 = arith.constant dense<0.000000e+00> : vector<8x128xf32>
    %213 = tpu.matmul %210, %0, %cst_45 {dimension_numbers = #tpu.dot_dimension_numbers<[1], [0], [0], [1], [0, 0, 1, 1], [], []>} : vector<8x32xf32>, vector<32x128xf32>, vector<8x128xf32> -> vector<8x128xf32>
    %214 = arith.addf %212, %213 : vector<8x128xf32>
    %215 = vector.extract_strided_slice %214 {offsets = [0, 0], sizes = [8, 32], strides = [1, 1]} : vector<8x128xf32> to vector<8x32xf32>
    %216 = arith.negf %215 : vector<8x32xf32>
    %217 = math.exp %216 : vector<8x32xf32>
    %cst_46 = arith.constant 1.000000e+00 : f32
    %218 = vector.broadcast %cst_46 : f32 to vector<8x32xf32>
    %219 = arith.addf %218, %217 : vector<8x32xf32>
    %220 = arith.divf %218, %219 : vector<8x32xf32>
    %221 = vector.extract_strided_slice %214 {offsets = [0, 32], sizes = [8, 32], strides = [1, 1]} : vector<8x128xf32> to vector<8x32xf32>
    %222 = arith.negf %221 : vector<8x32xf32>
    %223 = math.exp %222 : vector<8x32xf32>
    %cst_47 = arith.constant 1.000000e+00 : f32
    %224 = vector.broadcast %cst_47 : f32 to vector<8x32xf32>
    %225 = arith.addf %224, %223 : vector<8x32xf32>
    %226 = arith.divf %224, %225 : vector<8x32xf32>
    %227 = vector.extract_strided_slice %214 {offsets = [0, 64], sizes = [8, 32], strides = [1, 1]} : vector<8x128xf32> to vector<8x32xf32>
    %228 = math.tanh %227 : vector<8x32xf32>
    %229 = vector.extract_strided_slice %214 {offsets = [0, 96], sizes = [8, 32], strides = [1, 1]} : vector<8x128xf32> to vector<8x32xf32>
    %230 = arith.negf %229 : vector<8x32xf32>
    %231 = math.exp %230 : vector<8x32xf32>
    %cst_48 = arith.constant 1.000000e+00 : f32
    %232 = vector.broadcast %cst_48 : f32 to vector<8x32xf32>
    %233 = arith.addf %232, %231 : vector<8x32xf32>
    %234 = arith.divf %232, %233 : vector<8x32xf32>
    %235 = arith.mulf %226, %208 : vector<8x32xf32>
    %236 = arith.mulf %220, %228 : vector<8x32xf32>
    %237 = arith.addf %235, %236 : vector<8x32xf32>
    %238 = math.tanh %237 : vector<8x32xf32>
    %239 = arith.mulf %234, %238 : vector<8x32xf32>
    %c56 = arith.constant 56 : index
    %c0_49 = arith.constant 0 : index
    %240 = vector.load %arg9[%c56, %c0_49] : memref<64x32xf32, #tpu.memory_space<vmem>>, vector<8x32xf32>
    tpu.vector_store %arg9[%c56, %c0_49], %239 {strides = array<i32>} : memref<64x32xf32, #tpu.memory_space<vmem>>, vector<8x32xf32>,
    %c0_50 = arith.constant 0 : index
    %c0_51 = arith.constant 0 : index
    %241 = vector.load %arg9[%c0_50, %c0_51] : memref<64x32xf32, #tpu.memory_space<vmem>>, vector<64x32xf32>
    %c0_52 = arith.constant 0 : index
    %c0_53 = arith.constant 0 : index
    %242 = vector.load %arg4[%c0_52, %c0_53] : memref<32x64xf32, #tpu.memory_space<vmem>>, vector<32x64xf32>
    %cst_54 = arith.constant dense<0.000000e+00> : vector<64x64xf32>
    %243 = tpu.matmul %241, %242, %cst_54 {dimension_numbers = #tpu.dot_dimension_numbers<[1], [0], [0], [1], [0, 0, 1, 1], [], []>} : vector<64x32xf32>, vector<32x64xf32>, vector<64x64xf32> -> vector<64x64xf32>
    %c0_55 = arith.constant 0 : index
    %c0_56 = arith.constant 0 : index
    %244 = vector.load %arg5[%c0_55, %c0_56] : memref<1x64xf32, #tpu.memory_space<vmem>>, vector<1x64xf32>
    %245 = vector.broadcast %244 : vector<1x64xf32> to vector<64x64xf32>
    %246 = arith.addf %243, %245 : vector<64x64xf32>
    %cst_57 = arith.constant 0.000000e+00 : f32
    %247 = vector.broadcast %cst_57 : f32 to vector<64x64xf32>
    %248 = arith.maximumf %246, %247 : vector<64x64xf32>
    %c0_58 = arith.constant 0 : index
    %c0_59 = arith.constant 0 : index
    %249 = vector.load %arg6[%c0_58, %c0_59] : memref<64x128xf32, #tpu.memory_space<vmem>>, vector<64x128xf32>
    %cst_60 = arith.constant dense<0.000000e+00> : vector<64x128xf32>
    %250 = tpu.matmul %248, %249, %cst_60 {dimension_numbers = #tpu.dot_dimension_numbers<[1], [0], [0], [1], [0, 0, 1, 1], [], []>} : vector<64x64xf32>, vector<64x128xf32>, vector<64x128xf32> -> vector<64x128xf32>
    %c0_61 = arith.constant 0 : index
    %c0_62 = arith.constant 0 : index
    %251 = vector.load %arg7[%c0_61, %c0_62] : memref<1x128xf32, #tpu.memory_space<vmem>>, vector<1x128xf32>
    %252 = vector.broadcast %251 : vector<1x128xf32> to vector<64x128xf32>
    %253 = arith.addf %250, %252 : vector<64x128xf32>
    %c0_63 = arith.constant 0 : index
    %c0_64 = arith.constant 0 : index
    %254 = vector.load %arg8[%c0_63, %c0_64] : memref<64x128xf32, #tpu.memory_space<vmem>>, vector<64x128xf32>
    tpu.vector_store %arg8[%c0_63, %c0_64], %253 {strides = array<i32>} : memref<64x128xf32, #tpu.memory_space<vmem>>, vector<64x128xf32>,
    return
  }
}

</mosaic_0001>

<llo_original>
// kernel: encoder_forward.1
$region0: #{encoder_forward.1}
  #allocation0 [shape = 'u32[]', space=smem, size = 0x4, offset = 0x4, fixed_abs, tag = 'smem constant byte address 0x4 - core index']
  #allocation1 [shape = 'u32[144,128]{1,0:T(1,128)}', space=vmem, size = 0x12000, scoped, tag = 'internal scratch']
  #allocation2 [shape = 'f32[64,32]{1,0:T(8,128)}', space=vmem, size = 0x8000, scoped, tag = 'scratch operand']
  %s0 = inlined_call_operand.vmem [shape: f32[64,64], index: 0, kind: input, shape index: {}]
  %s1 = inlined_call_operand.vmem [shape: f32[64,128], index: 1, kind: input, shape index: {}]
  %s2 = inlined_call_operand.vmem [shape: f32[32,128], index: 2, kind: input, shape index: {}]
  %s3 = inlined_call_operand.vmem [shape: f32[1,128], index: 3, kind: input, shape index: {}]
  %s4 = inlined_call_operand.vmem [shape: f32[32,64], index: 4, kind: input, shape index: {}]
  %s5 = inlined_call_operand.vmem [shape: f32[1,64], index: 5, kind: input, shape index: {}]
  %s6 = inlined_call_operand.vmem [shape: f32[64,128], index: 6, kind: input, shape index: {}]
  %s7 = inlined_call_operand.vmem [shape: f32[1,128], index: 7, kind: input, shape index: {}]
  %s8 = inlined_call_operand.vmem [shape: f32[64,128], index: 8, kind: output, shape index: {}]
  %s9 = sld [smem:[#allocation0]]
  $region42: #{encoder_forward.1} parent=0
    _
  %s11 = ssub.s32 1, %s9
  %s12 = scalar_select 0, %s11, %s9
  // Predicated region
  $region2: #{encoder_forward.1} parent=0 // pred_check
    _
  $region3: #{encoder_forward.1} parent=0 // pred_check_branch
    %14 = sbr.rel (0) target = $region5
  $region4: #{encoder_forward.1} parent=0 // pred_region
    _
  $region5: #{encoder_forward.1} parent=0 // pred_fallthru
    _
  // Predicated region
  $region6: #{encoder_forward.1} parent=0 // pred_check
    _
  $region7: #{encoder_forward.1} parent=0 // pred_check_branch
    %16 = sbr.rel (0) target = $region9
  $region8: #{encoder_forward.1} parent=0 // pred_region
    _
  $region9: #{encoder_forward.1} parent=0 // pred_fallthru
    _
  // Predicated region
  $region10: #{encoder_forward.1} parent=0 // pred_check
    _
  $region11: #{encoder_forward.1} parent=0 // pred_check_branch
    %18 = sbr.rel (0) target = $region13
  $region12: #{encoder_forward.1} parent=0 // pred_region
    _
  $region13: #{encoder_forward.1} parent=0 // pred_fallthru
    _
  // Predicated region
  $region14: #{encoder_forward.1} parent=0 // pred_check
    _
  $region15: #{encoder_forward.1} parent=0 // pred_check_branch
    %20 = sbr.rel (0) target = $region17
  $region16: #{encoder_forward.1} parent=0 // pred_region
    _
  $region17: #{encoder_forward.1} parent=0 // pred_fallthru
    _
  // Predicated region
  $region18: #{encoder_forward.1} parent=0 // pred_check
    _
  $region19: #{encoder_forward.1} parent=0 // pred_check_branch
    %22 = sbr.rel (0) target = $region21
  $region20: #{encoder_forward.1} parent=0 // pred_region
    _
  $region21: #{encoder_forward.1} parent=0 // pred_fallthru
    _
  // Predicated region
  $region22: #{encoder_forward.1} parent=0 // pred_check
    _
  $region23: #{encoder_forward.1} parent=0 // pred_check_branch
    %24 = sbr.rel (0) target = $region25
  $region24: #{encoder_forward.1} parent=0 // pred_region
    _
  $region25: #{encoder_forward.1} parent=0 // pred_fallthru
    _
  // Predicated region
  $region26: #{encoder_forward.1} parent=0 // pred_check
    _
  $region27: #{encoder_forward.1} parent=0 // pred_check_branch
    %26 = sbr.rel (0) target = $region29
  $region28: #{encoder_forward.1} parent=0 // pred_region
    _
  $region29: #{encoder_forward.1} parent=0 // pred_fallthru
    _
  // Predicated region
  $region30: #{encoder_forward.1} parent=0 // pred_check
    _
  $region31: #{encoder_forward.1} parent=0 // pred_check_branch
    %28 = sbr.rel (0) target = $region33
  $region32: #{encoder_forward.1} parent=0 // pred_region
    _
  $region33: #{encoder_forward.1} parent=0 // pred_fallthru
    _
  %v29 = vld [vmem:[%s2] sm:$0xff]
  %v30 = vld [vmem:[%s2 + $0x8] sm:$0xff]
  %v31 = vld [vmem:[%s2 + $0x10] sm:$0xff]
  %v32 = vld [vmem:[%s2 + $0x18] sm:$0xff]
  %v33 = vld [vmem:[%s0] sm:$0xff]
  %v34 = vld [vmem:[%s0 + $0x8] sm:$0xff]
  %v35 = vld [vmem:[%s0 + $0x10] sm:$0xff]
  %v36 = vld [vmem:[%s0 + $0x18] sm:$0xff]
  %v37 = vld [vmem:[%s0 + $0x20] sm:$0xff]
  %v38 = vld [vmem:[%s0 + $0x28] sm:$0xff]
  %v39 = vld [vmem:[%s0 + $0x30] sm:$0xff]
  %v40 = vld [vmem:[%s0 + $0x38] sm:$0xff]
  %v41 = vld [vmem:[%s1] sm:$0xff]
  %v42 = vld [vmem:[%s1 + $0x8] sm:$0xff]
  %v43 = vld [vmem:[%s1 + $0x10] sm:$0xff]
  %v44 = vld [vmem:[%s1 + $0x18] sm:$0xff]
  %v45 = vld [vmem:[%s1 + $0x20] sm:$0xff]
  %v46 = vld [vmem:[%s1 + $0x28] sm:$0xff]
  %v47 = vld [vmem:[%s1 + $0x30] sm:$0xff]
  %v48 = vld [vmem:[%s1 + $0x38] sm:$0xff]
  %v49 = vld [vmem:[%s3] sm:$0x1]
  %v51 = vlaneseq
  %v52 = vshrl.u32 %v51, 7
  %v53 = vsub.s32 0, %v52
  %v54 = vrot.slane %v49, %v53
  %vm56 = vcmask 523264
  %v58 = vsel %vm56, %v33, 0
  %v61 = vsel %vm56, %v34, 0
  %v64 = vsel %vm56, %v35, 0
  %v67 = vsel %vm56, %v36, 0
  %v70 = vsel %vm56, %v37, 0
  %v73 = vsel %vm56, %v38, 0
  %v76 = vsel %vm56, %v39, 0
  %v79 = vsel %vm56, %v40, 0
  %81 = vmatprep.subr.mxu0 0.0
  %82 = vmatpush1.msra.mxu0 0.0
  %83 = vmatprep.subr.mxu0 0.0
  %84 = vmatpush1.msra.mxu0 0.0
  %85 = vmatprep.subr.mxu0 0.0
  %86 = vmatpush1.msra.mxu0 0.0
  %87 = vmatprep.subr.mxu0 0.0
  %88 = vmatpush1.msra.mxu0 0.0
  %89 = vmatprep.subr.mxu0 0.0
  %90 = vmatpush1.msra.mxu0 0.0
  %91 = vmatprep.subr.mxu0 0.0
  %92 = vmatpush1.msra.mxu0 0.0
  %93 = vmatprep.subr.mxu0 0.0
  %94 = vmatpush1.msra.mxu0 0.0
  %95 = vmatprep.subr.mxu0 0.0
  %96 = vmatpush1.msra.mxu0 0.0
  %97 = vmatprep.subr.mxu0 0.0
  %98 = vmatpush1.msra.mxu0 %v48
  %99 = vmatprep.subr.mxu0 0.0
  %100 = vmatpush1.msra.mxu0 %v47
  %101 = vmatprep.subr.mxu0 0.0
  %102 = vmatpush1.msra.mxu0 %v46
  %103 = vmatprep.subr.mxu0 0.0
  %104 = vmatpush1.msra.mxu0 %v45
  %105 = vmatprep.subr.mxu0 0.0
  %106 = vmatpush1.msra.mxu0 %v44
  %107 = vmatprep.subr.mxu0 0.0
  %108 = vmatpush1.msra.mxu0 %v43
  %109 = vmatprep.subr.mxu0 0.0
  %110 = vmatpush1.msra.mxu0 %v42
  %111 = vmatprep.subr.mxu0 0.0
  %112 = vmatpush1.msra.mxu0 %v41
  %113 = vmatprep.subr.mxu0 0.0
  %114 = vmatpush2.msra.mxu0 0.0
  %115 = vmatprep.subr.mxu0 0.0
  %116 = vmatpush2.msra.mxu0 0.0
  %117 = vmatprep.subr.mxu0 0.0
  %118 = vmatpush2.msra.mxu0 0.0
  %119 = vmatprep.subr.mxu0 0.0
  %120 = vmatpush2.msra.mxu0 0.0
  %121 = vmatprep.subr.mxu0 0.0
  %122 = vmatpush2.msra.mxu0 0.0
  %123 = vmatprep.subr.mxu0 0.0
  %124 = vmatpush2.msra.mxu0 0.0
  %125 = vmatprep.subr.mxu0 0.0
  %126 = vmatpush2.msra.mxu0 0.0
  %127 = vmatprep.subr.mxu0 0.0
  %128 = vmatpush2.msra.mxu0 0.0
  %129 = vmatprep.subr.mxu0 0.0
  %130 = vmatpush2.msra.mxu0 0.0
  %131 = vmatprep.subr.mxu0 0.0
  %132 = vmatpush2.msra.mxu0 0.0
  %133 = vmatprep.subr.mxu0 0.0
  %134 = vmatpush2.msra.mxu0 0.0
  %135 = vmatprep.subr.mxu0 0.0
  %136 = vmatpush2.msra.mxu0 0.0
  %137 = vmatprep.subr.mxu0 0.0
  %138 = vmatpush2.msra.mxu0 0.0
  %139 = vmatprep.subr.mxu0 0.0
  %140 = vmatpush2.msra.mxu0 0.0
  %141 = vmatprep.subr.mxu0 0.0
  %142 = vmatpush2.msra.mxu0 0.0
  %143 = vmatprep.subr.mxu0 0.0
  %144 = vmatpush2.msra.mxu0 0.0
  %145 = vmatprep.mubr.f32.mxu0 0.0
  %146 = vmatmul.mubr.f32.gmra.mxu0 %v58
  %v147 = vpop.f32.mrf.mxu0
  %v148 = vadd.f32 %v54, %v147
  %v149 = vpop.f32.mrf.mxu0
  %150 = vmatprep.mubr.f32.mxu0 0.0
  %151 = vmatmul.mubr.f32.gmra.mxu0 %v61
  %v152 = vpop.f32.mrf.mxu0
  %v153 = vadd.f32 %v54, %v152
  %v154 = vpop.f32.mrf.mxu0
  %155 = vmatprep.mubr.f32.mxu0 0.0
  %156 = vmatmul.mubr.f32.gmra.mxu0 %v64
  %v157 = vpop.f32.mrf.mxu0
  %v158 = vadd.f32 %v54, %v157
  %v159 = vpop.f32.mrf.mxu0
  %160 = vmatprep.mubr.f32.mxu0 0.0
  %161 = vmatmul.mubr.f32.gmra.mxu0 %v67
  %v162 = vpop.f32.mrf.mxu0
  %v163 = vadd.f32 %v54, %v162
  %v164 = vpop.f32.mrf.mxu0
  %165 = vmatprep.mubr.f32.mxu0 0.0
  %166 = vmatmul.mubr.f32.gmra.mxu0 %v70
  %v167 = vpop.f32.mrf.mxu0
  %v168 = vadd.f32 %v54, %v167
  %v169 = vpop.f32.mrf.mxu0
  %170 = vmatprep.mubr.f32.mxu0 0.0
  %171 = vmatmul.mubr.f32.gmra.mxu0 %v73
  %v172 = vpop.f32.mrf.mxu0
  %v173 = vadd.f32 %v54, %v172
  %v174 = vpop.f32.mrf.mxu0
  %175 = vmatprep.mubr.f32.mxu0 0.0
  %176 = vmatmul.mubr.f32.gmra.mxu0 %v76
  %v177 = vpop.f32.mrf.mxu0
  %v178 = vadd.f32 %v54, %v177
  %v179 = vpop.f32.mrf.mxu0
  %180 = vmatprep.mubr.f32.mxu0 0.0
  %181 = vmatmul.mubr.f32.gmra.mxu0 %v79
  %v182 = vpop.f32.mrf.mxu0
  %v183 = vadd.f32 %v54, %v182
  %v184 = vpop.f32.mrf.mxu0
  %185 = vdwg.mxu0
  %vm186 = vcmask 261120
  %v188 = vsel %vm186, 0.0, 0
  %190 = vmatprep.subr.mxu0 0.0
  %191 = vmatpush1.msra.mxu0 0.0
  %192 = vmatprep.subr.mxu0 0.0
  %193 = vmatpush1.msra.mxu0 0.0
  %194 = vmatprep.subr.mxu0 0.0
  %195 = vmatpush1.msra.mxu0 0.0
  %196 = vmatprep.subr.mxu0 0.0
  %197 = vmatpush1.msra.mxu0 0.0
  %198 = vmatprep.subr.mxu0 0.0
  %199 = vmatpush1.msra.mxu0 0.0
  %200 = vmatprep.subr.mxu0 0.0
  %201 = vmatpush1.msra.mxu0 0.0
  %202 = vmatprep.subr.mxu0 0.0
  %203 = vmatpush1.msra.mxu0 0.0
  %204 = vmatprep.subr.mxu0 0.0
  %205 = vmatpush1.msra.mxu0 0.0
  %206 = vmatprep.subr.mxu0 0.0
  %207 = vmatpush1.msra.mxu0 0.0
  %208 = vmatprep.subr.mxu0 0.0
  %209 = vmatpush1.msra.mxu0 0.0
  %210 = vmatprep.subr.mxu0 0.0
  %211 = vmatpush1.msra.mxu0 0.0
  %212 = vmatprep.subr.mxu0 0.0
  %213 = vmatpush1.msra.mxu0 0.0
  %214 = vmatprep.subr.mxu0 0.0
  %215 = vmatpush1.msra.mxu0 %v32
  %216 = vmatprep.subr.mxu0 0.0
  %217 = vmatpush1.msra.mxu0 %v31
  %218 = vmatprep.subr.mxu0 0.0
  %219 = vmatpush1.msra.mxu0 %v30
  %220 = vmatprep.subr.mxu0 0.0
  %221 = vmatpush1.msra.mxu0 %v29
  %222 = vmatprep.subr.mxu0 0.0
  %223 = vmatpush2.msra.mxu0 0.0
  %224 = vmatprep.subr.mxu0 0.0
  %225 = vmatpush2.msra.mxu0 0.0
  %226 = vmatprep.subr.mxu0 0.0
  %227 = vmatpush2.msra.mxu0 0.0
  %228 = vmatprep.subr.mxu0 0.0
  %229 = vmatpush2.msra.mxu0 0.0
  %230 = vmatprep.subr.mxu0 0.0
  %231 = vmatpush2.msra.mxu0 0.0
  %232 = vmatprep.subr.mxu0 0.0
  %233 = vmatpush2.msra.mxu0 0.0
  %234 = vmatprep.subr.mxu0 0.0
  %235 = vmatpush2.msra.mxu0 0.0
  %236 = vmatprep.subr.mxu0 0.0
  %237 = vmatpush2.msra.mxu0 0.0
  %238 = vmatprep.subr.mxu0 0.0
  %239 = vmatpush2.msra.mxu0 0.0
  %240 = vmatprep.subr.mxu0 0.0
  %241 = vmatpush2.msra.mxu0 0.0
  %242 = vmatprep.subr.mxu0 0.0
  %243 = vmatpush2.msra.mxu0 0.0
  %244 = vmatprep.subr.mxu0 0.0
  %245 = vmatpush2.msra.mxu0 0.0
  %246 = vmatprep.subr.mxu0 0.0
  %247 = vmatpush2.msra.mxu0 0.0
  %248 = vmatprep.subr.mxu0 0.0
  %249 = vmatpush2.msra.mxu0 0.0
  %250 = vmatprep.subr.mxu0 0.0
  %251 = vmatpush2.msra.mxu0 0.0
  %252 = vmatprep.subr.mxu0 0.0
  %253 = vmatpush2.msra.mxu0 0.0
  %254 = vmatprep.mubr.f32.mxu0 0.0
  %255 = vmatmul.mubr.f32.gmra.mxu0 %v188
  %v256 = vpop.f32.mrf.mxu0
  %v257 = vadd.f32 0.0, %v256
  %v258 = vpop.f32.mrf.mxu0
  %259 = vdwg.mxu0
  %v260 = vadd.f32 %v148, %v257
  %v261 = vxor.u32 %v260, 2147483648
  %v262 = vmul.f32 %v261, 1.442695
  %v263 = vpow.pop %v262
  %v264 = vadd.f32 %v263, 1.0
  %v265 = vrcp.pop %v264
  %v266 = vmul.f32 1.0, %v265
  %v267 = vtanh.pop %v260
  %v268 = vmul.f32 %v266, 0.0
  %270 = vrot.lane.b32.xlu0 %v267, 64
  %v271 = vpop.permute.xlu0 %270
  %v273 = vmul.f32 %v266, %v271
  %275 = vrot.lane.b32.xlu0 %v273, 32
  %v276 = vpop.permute.xlu0 %275
  %v278 = vadd.f32 %v268, %v276
  %v279 = vtanh.pop %v278
  %281 = vrot.lane.b32.xlu0 %v279, 64
  %v282 = vpop.permute.xlu0 %281
  %v284 = vmul.f32 %v266, %v282
  %286 = vrot.lane.b32.xlu0 %v284, 32
  %v287 = vpop.permute.xlu0 %286
  %289 = vst.msk [vmem:[#allocation2] sm:$0xff] %vm186, %v287
  %v290 = vsel %vm186, %v287, 0
  %292 = vmatprep.subr.mxu0 0.0
  %293 = vmatpush1.msra.mxu0 0.0
  %294 = vmatprep.subr.mxu0 0.0
  %295 = vmatpush1.msra.mxu0 0.0
  %296 = vmatprep.subr.mxu0 0.0
  %297 = vmatpush1.msra.mxu0 0.0
  %298 = vmatprep.subr.mxu0 0.0
  %299 = vmatpush1.msra.mxu0 0.0
  %300 = vmatprep.subr.mxu0 0.0
  %301 = vmatpush1.msra.mxu0 0.0
  %302 = vmatprep.subr.mxu0 0.0
  %303 = vmatpush1.msra.mxu0 0.0
  %304 = vmatprep.subr.mxu0 0.0
  %305 = vmatpush1.msra.mxu0 0.0
  %306 = vmatprep.subr.mxu0 0.0
  %307 = vmatpush1.msra.mxu0 0.0
  %308 = vmatprep.subr.mxu0 0.0
  %309 = vmatpush1.msra.mxu0 0.0
  %310 = vmatprep.subr.mxu0 0.0
  %311 = vmatpush1.msra.mxu0 0.0
  %312 = vmatprep.subr.mxu0 0.0
  %313 = vmatpush1.msra.mxu0 0.0
  %314 = vmatprep.subr.mxu0 0.0
  %315 = vmatpush1.msra.mxu0 0.0
  %316 = vmatprep.subr.mxu0 0.0
  %317 = vmatpush1.msra.mxu0 %v32
  %318 = vmatprep.subr.mxu0 0.0
  %319 = vmatpush1.msra.mxu0 %v31
  %320 = vmatprep.subr.mxu0 0.0
  %321 = vmatpush1.msra.mxu0 %v30
  %322 = vmatprep.subr.mxu0 0.0
  %323 = vmatpush1.msra.mxu0 %v29
  %324 = vmatprep.subr.mxu0 0.0
  %325 = vmatpush2.msra.mxu0 0.0
  %326 = vmatprep.subr.mxu0 0.0
  %327 = vmatpush2.msra.mxu0 0.0
  %328 = vmatprep.subr.mxu0 0.0
  %329 = vmatpush2.msra.mxu0 0.0
  %330 = vmatprep.subr.mxu0 0.0
  %331 = vmatpush2.msra.mxu0 0.0
  %332 = vmatprep.subr.mxu0 0.0
  %333 = vmatpush2.msra.mxu0 0.0
  %334 = vmatprep.subr.mxu0 0.0
  %335 = vmatpush2.msra.mxu0 0.0
  %336 = vmatprep.subr.mxu0 0.0
  %337 = vmatpush2.msra.mxu0 0.0
  %338 = vmatprep.subr.mxu0 0.0
  %339 = vmatpush2.msra.mxu0 0.0
  %340 = vmatprep.subr.mxu0 0.0
  %341 = vmatpush2.msra.mxu0 0.0
  %342 = vmatprep.subr.mxu0 0.0
  %343 = vmatpush2.msra.mxu0 0.0
  %344 = vmatprep.subr.mxu0 0.0
  %345 = vmatpush2.msra.mxu0 0.0
  %346 = vmatprep.subr.mxu0 0.0
  %347 = vmatpush2.msra.mxu0 0.0
  %348 = vmatprep.subr.mxu0 0.0
  %349 = vmatpush2.msra.mxu0 0.0
  %350 = vmatprep.subr.mxu0 0.0
  %351 = vmatpush2.msra.mxu0 0.0
  %352 = vmatprep.subr.mxu0 0.0
  %353 = vmatpush2.msra.mxu0 0.0
  %354 = vmatprep.subr.mxu0 0.0
  %355 = vmatpush2.msra.mxu0 0.0
  %356 = vmatprep.mubr.f32.mxu0 0.0
  %357 = vmatmul.mubr.f32.gmra.mxu0 %v290
  %v358 = vpop.f32.mrf.mxu0
  %v359 = vadd.f32 0.0, %v358
  %v360 = vpop.f32.mrf.mxu0
  %361 = vdwg.mxu0
  %v362 = vadd.f32 %v153, %v359
  %v363 = vxor.u32 %v362, 2147483648
  %v364 = vmul.f32 %v363, 1.442695
  %v365 = vpow.pop %v364
  %v366 = vadd.f32 %v365, 1.0
  %v367 = vrcp.pop %v366
  %v368 = vmul.f32 1.0, %v367
  %v369 = vtanh.pop %v362
  %v370 = vmul.f32 %v368, %v278
  %372 = vrot.lane.b32.xlu0 %v369, 64
  %v373 = vpop.permute.xlu0 %372
  %v375 = vmul.f32 %v368, %v373
  %377 = vrot.lane.b32.xlu0 %v375, 32
  %v378 = vpop.permute.xlu0 %377
  %v380 = vadd.f32 %v370, %v378
  %v381 = vtanh.pop %v380
  %383 = vrot.lane.b32.xlu0 %v381, 64
  %v384 = vpop.permute.xlu0 %383
  %v386 = vmul.f32 %v368, %v384
  %388 = vrot.lane.b32.xlu0 %v386, 32
  %v389 = vpop.permute.xlu0 %388
  %391 = vst.msk [vmem:[#allocation2 + $0x8] sm:$0xff] %vm186, %v389
  %v392 = vsel %vm186, %v389, 0
  %394 = vmatprep.subr.mxu0 0.0
  %395 = vmatpush1.msra.mxu0 0.0
  %396 = vmatprep.subr.mxu0 0.0
  %397 = vmatpush1.msra.mxu0 0.0
  %398 = vmatprep.subr.mxu0 0.0
  %399 = vmatpush1.msra.mxu0 0.0
  %400 = vmatprep.subr.mxu0 0.0
  %401 = vmatpush1.msra.mxu0 0.0
  %402 = vmatprep.subr.mxu0 0.0
  %403 = vmatpush1.msra.mxu0 0.0
  %404 = vmatprep.subr.mxu0 0.0
  %405 = vmatpush1.msra.mxu0 0.0
  %406 = vmatprep.subr.mxu0 0.0
  %407 = vmatpush1.msra.mxu0 0.0
  %408 = vmatprep.subr.mxu0 0.0
  %409 = vmatpush1.msra.mxu0 0.0
  %410 = vmatprep.subr.mxu0 0.0
  %411 = vmatpush1.msra.mxu0 0.0
  %412 = vmatprep.subr.mxu0 0.0
  %413 = vmatpush1.msra.mxu0 0.0
  %414 = vmatprep.subr.mxu0 0.0
  %415 = vmatpush1.msra.mxu0 0.0
  %416 = vmatprep.subr.mxu0 0.0
  %417 = vmatpush1.msra.mxu0 0.0
  %418 = vmatprep.subr.mxu0 0.0
  %419 = vmatpush1.msra.mxu0 %v32
  %420 = vmatprep.subr.mxu0 0.0
  %421 = vmatpush1.msra.mxu0 %v31
  %422 = vmatprep.subr.mxu0 0.0
  %423 = vmatpush1.msra.mxu0 %v30
  %424 = vmatprep.subr.mxu0 0.0
  %425 = vmatpush1.msra.mxu0 %v29
  %426 = vmatprep.subr.mxu0 0.0
  %427 = vmatpush2.msra.mxu0 0.0
  %428 = vmatprep.subr.mxu0 0.0
  %429 = vmatpush2.msra.mxu0 0.0
  %430 = vmatprep.subr.mxu0 0.0
  %431 = vmatpush2.msra.mxu0 0.0
  %432 = vmatprep.subr.mxu0 0.0
  %433 = vmatpush2.msra.mxu0 0.0
  %434 = vmatprep.subr.mxu0 0.0
  %435 = vmatpush2.msra.mxu0 0.0
  %436 = vmatprep.subr.mxu0 0.0
  %437 = vmatpush2.msra.mxu0 0.0
  %438 = vmatprep.subr.mxu0 0.0
  %439 = vmatpush2.msra.mxu0 0.0
  %440 = vmatprep.subr.mxu0 0.0
  %441 = vmatpush2.msra.mxu0 0.0
  %442 = vmatprep.subr.mxu0 0.0
  %443 = vmatpush2.msra.mxu0 0.0
  %444 = vmatprep.subr.mxu0 0.0
  %445 = vmatpush2.msra.mxu0 0.0
  %446 = vmatprep.subr.mxu0 0.0
  %447 = vmatpush2.msra.mxu0 0.0
  %448 = vmatprep.subr.mxu0 0.0
  %449 = vmatpush2.msra.mxu0 0.0
  %450 = vmatprep.subr.mxu0 0.0
  %451 = vmatpush2.msra.mxu0 0.0
  %452 = vmatprep.subr.mxu0 0.0
  %453 = vmatpush2.msra.mxu0 0.0
  %454 = vmatprep.subr.mxu0 0.0
  %455 = vmatpush2.msra.mxu0 0.0
  %456 = vmatprep.subr.mxu0 0.0
  %457 = vmatpush2.msra.mxu0 0.0
  %458 = vmatprep.mubr.f32.mxu0 0.0
  %459 = vmatmul.mubr.f32.gmra.mxu0 %v392
  %v460 = vpop.f32.mrf.mxu0
  %v461 = vadd.f32 0.0, %v460
  %v462 = vpop.f32.mrf.mxu0
  %463 = vdwg.mxu0
  %v464 = vadd.f32 %v158, %v461
  %v465 = vxor.u32 %v464, 2147483648
  %v466 = vmul.f32 %v465, 1.442695
  %v467 = vpow.pop %v466
  %v468 = vadd.f32 %v467, 1.0
  %v469 = vrcp.pop %v468
  %v470 = vmul.f32 1.0, %v469
  %v471 = vtanh.pop %v464
  %v472 = vmul.f32 %v470, %v380
  %474 = vrot.lane.b32.xlu0 %v471, 64
  %v475 = vpop.permute.xlu0 %474
  %v477 = vmul.f32 %v470, %v475
  %479 = vrot.lane.b32.xlu0 %v477, 32
  %v480 = vpop.permute.xlu0 %479
  %v482 = vadd.f32 %v472, %v480
  %v483 = vtanh.pop %v482
  %485 = vrot.lane.b32.xlu0 %v483, 64
  %v486 = vpop.permute.xlu0 %485
  %v488 = vmul.f32 %v470, %v486
  %490 = vrot.lane.b32.xlu0 %v488, 32
  %v491 = vpop.permute.xlu0 %490
  %493 = vst.msk [vmem:[#allocation2 + $0x10] sm:$0xff] %vm186, %v491
  %v494 = vsel %vm186, %v491, 0
  %496 = vmatprep.subr.mxu0 0.0
  %497 = vmatpush1.msra.mxu0 0.0
  %498 = vmatprep.subr.mxu0 0.0
  %499 = vmatpush1.msra.mxu0 0.0
  %500 = vmatprep.subr.mxu0 0.0
  %501 = vmatpush1.msra.mxu0 0.0
  %502 = vmatprep.subr.mxu0 0.0
  %503 = vmatpush1.msra.mxu0 0.0
  %504 = vmatprep.subr.mxu0 0.0
  %505 = vmatpush1.msra.mxu0 0.0
  %506 = vmatprep.subr.mxu0 0.0
  %507 = vmatpush1.msra.mxu0 0.0
  %508 = vmatprep.subr.mxu0 0.0
  %509 = vmatpush1.msra.mxu0 0.0
  %510 = vmatprep.subr.mxu0 0.0
  %511 = vmatpush1.msra.mxu0 0.0
  %512 = vmatprep.subr.mxu0 0.0
  %513 = vmatpush1.msra.mxu0 0.0
  %514 = vmatprep.subr.mxu0 0.0
  %515 = vmatpush1.msra.mxu0 0.0
  %516 = vmatprep.subr.mxu0 0.0
  %517 = vmatpush1.msra.mxu0 0.0
  %518 = vmatprep.subr.mxu0 0.0
  %519 = vmatpush1.msra.mxu0 0.0
  %520 = vmatprep.subr.mxu0 0.0
  %521 = vmatpush1.msra.mxu0 %v32
  %522 = vmatprep.subr.mxu0 0.0
  %523 = vmatpush1.msra.mxu0 %v31
  %524 = vmatprep.subr.mxu0 0.0
  %525 = vmatpush1.msra.mxu0 %v30
  %526 = vmatprep.subr.mxu0 0.0
  %527 = vmatpush1.msra.mxu0 %v29
  %528 = vmatprep.subr.mxu0 0.0
  %529 = vmatpush2.msra.mxu0 0.0
  %530 = vmatprep.subr.mxu0 0.0
  %531 = vmatpush2.msra.mxu0 0.0
  %532 = vmatprep.subr.mxu0 0.0
  %533 = vmatpush2.msra.mxu0 0.0
  %534 = vmatprep.subr.mxu0 0.0
  %535 = vmatpush2.msra.mxu0 0.0
  %536 = vmatprep.subr.mxu0 0.0
  %537 = vmatpush2.msra.mxu0 0.0
  %538 = vmatprep.subr.mxu0 0.0
  %539 = vmatpush2.msra.mxu0 0.0
  %540 = vmatprep.subr.mxu0 0.0
  %541 = vmatpush2.msra.mxu0 0.0
  %542 = vmatprep.subr.mxu0 0.0
  %543 = vmatpush2.msra.mxu0 0.0
  %544 = vmatprep.subr.mxu0 0.0
  %545 = vmatpush2.msra.mxu0 0.0
  %546 = vmatprep.subr.mxu0 0.0
  %547 = vmatpush2.msra.mxu0 0.0
  %548 = vmatprep.subr.mxu0 0.0
  %549 = vmatpush2.msra.mxu0 0.0
  %550 = vmatprep.subr.mxu0 0.0
  %551 = vmatpush2.msra.mxu0 0.0
  %552 = vmatprep.subr.mxu0 0.0
  %553 = vmatpush2.msra.mxu0 0.0
  %554 = vmatprep.subr.mxu0 0.0
  %555 = vmatpush2.msra.mxu0 0.0
  %556 = vmatprep.subr.mxu0 0.0
  %557 = vmatpush2.msra.mxu0 0.0
  %558 = vmatprep.subr.mxu0 0.0
  %559 = vmatpush2.msra.mxu0 0.0
  %560 = vmatprep.mubr.f32.mxu0 0.0
  %561 = vmatmul.mubr.f32.gmra.mxu0 %v494
  %v562 = vpop.f32.mrf.mxu0
  %v563 = vadd.f32 0.0, %v562
  %v564 = vpop.f32.mrf.mxu0
  %565 = vdwg.mxu0
  %v566 = vadd.f32 %v163, %v563
  %v567 = vxor.u32 %v566, 2147483648
  %v568 = vmul.f32 %v567, 1.442695
  %v569 = vpow.pop %v568
  %v570 = vadd.f32 %v569, 1.0
  %v571 = vrcp.pop %v570
  %v572 = vmul.f32 1.0, %v571
  %v573 = vtanh.pop %v566
  %v574 = vmul.f32 %v572, %v482
  %576 = vrot.lane.b32.xlu0 %v573, 64
  %v577 = vpop.permute.xlu0 %576
  %v579 = vmul.f32 %v572, %v577
  %581 = vrot.lane.b32.xlu0 %v579, 32
  %v582 = vpop.permute.xlu0 %581
  %v584 = vadd.f32 %v574, %v582
  %v585 = vtanh.pop %v584
  %587 = vrot.lane.b32.xlu0 %v585, 64
  %v588 = vpop.permute.xlu0 %587
  %v590 = vmul.f32 %v572, %v588
  %592 = vrot.lane.b32.xlu0 %v590, 32
  %v593 = vpop.permute.xlu0 %592
  %595 = vst.msk [vmem:[#allocation2 + $0x18] sm:$0xff] %vm186, %v593
  %v596 = vsel %vm186, %v593, 0
  %598 = vmatprep.subr.mxu0 0.0
  %599 = vmatpush1.msra.mxu0 0.0
  %600 = vmatprep.subr.mxu0 0.0
  %601 = vmatpush1.msra.mxu0 0.0
  %602 = vmatprep.subr.mxu0 0.0
  %603 = vmatpush1.msra.mxu0 0.0
  %604 = vmatprep.subr.mxu0 0.0
  %605 = vmatpush1.msra.mxu0 0.0
  %606 = vmatprep.subr.mxu0 0.0
  %607 = vmatpush1.msra.mxu0 0.0
  %608 = vmatprep.subr.mxu0 0.0
  %609 = vmatpush1.msra.mxu0 0.0
  %610 = vmatprep.subr.mxu0 0.0
  %611 = vmatpush1.msra.mxu0 0.0
  %612 = vmatprep.subr.mxu0 0.0
  %613 = vmatpush1.msra.mxu0 0.0
  %614 = vmatprep.subr.mxu0 0.0
  %615 = vmatpush1.msra.mxu0 0.0
  %616 = vmatprep.subr.mxu0 0.0
  %617 = vmatpush1.msra.mxu0 0.0
  %618 = vmatprep.subr.mxu0 0.0
  %619 = vmatpush1.msra.mxu0 0.0
  %620 = vmatprep.subr.mxu0 0.0
  %621 = vmatpush1.msra.mxu0 0.0
  %622 = vmatprep.subr.mxu0 0.0
  %623 = vmatpush1.msra.mxu0 %v32
  %624 = vmatprep.subr.mxu0 0.0
  %625 = vmatpush1.msra.mxu0 %v31
  %626 = vmatprep.subr.mxu0 0.0
  %627 = vmatpush1.msra.mxu0 %v30
  %628 = vmatprep.subr.mxu0 0.0
  %629 = vmatpush1.msra.mxu0 %v29
  %630 = vmatprep.subr.mxu0 0.0
  %631 = vmatpush2.msra.mxu0 0.0
  %632 = vmatprep.subr.mxu0 0.0
  %633 = vmatpush2.msra.mxu0 0.0
  %634 = vmatprep.subr.mxu0 0.0
  %635 = vmatpush2.msra.mxu0 0.0
  %636 = vmatprep.subr.mxu0 0.0
  %637 = vmatpush2.msra.mxu0 0.0
  %638 = vmatprep.subr.mxu0 0.0
  %639 = vmatpush2.msra.mxu0 0.0
  %640 = vmatprep.subr.mxu0 0.0
  %641 = vmatpush2.msra.mxu0 0.0
  %642 = vmatprep.subr.mxu0 0.0
  %643 = vmatpush2.msra.mxu0 0.0
  %644 = vmatprep.subr.mxu0 0.0
  %645 = vmatpush2.msra.mxu0 0.0
  %646 = vmatprep.subr.mxu0 0.0
  %647 = vmatpush2.msra.mxu0 0.0
  %648 = vmatprep.subr.mxu0 0.0
  %649 = vmatpush2.msra.mxu0 0.0
  %650 = vmatprep.subr.mxu0 0.0
  %651 = vmatpush2.msra.mxu0 0.0
  %652 = vmatprep.subr.mxu0 0.0
  %653 = vmatpush2.msra.mxu0 0.0
  %654 = vmatprep.subr.mxu0 0.0
  %655 = vmatpush2.msra.mxu0 0.0
  %656 = vmatprep.subr.mxu0 0.0
  %657 = vmatpush2.msra.mxu0 0.0
  %658 = vmatprep.subr.mxu0 0.0
  %659 = vmatpush2.msra.mxu0 0.0
  %660 = vmatprep.subr.mxu0 0.0
  %661 = vmatpush2.msra.mxu0 0.0
  %662 = vmatprep.mubr.f32.mxu0 0.0
  %663 = vmatmul.mubr.f32.gmra.mxu0 %v596
  %v664 = vpop.f32.mrf.mxu0
  %v665 = vadd.f32 0.0, %v664
  %v666 = vpop.f32.mrf.mxu0
  %667 = vdwg.mxu0
  %v668 = vadd.f32 %v168, %v665
  %v669 = vxor.u32 %v668, 2147483648
  %v670 = vmul.f32 %v669, 1.442695
  %v671 = vpow.pop %v670
  %v672 = vadd.f32 %v671, 1.0
  %v673 = vrcp.pop %v672
  %v674 = vmul.f32 1.0, %v673
  %v675 = vtanh.pop %v668
  %v676 = vmul.f32 %v674, %v584
  %678 = vrot.lane.b32.xlu0 %v675, 64
  %v679 = vpop.permute.xlu0 %678
  %v681 = vmul.f32 %v674, %v679
  %683 = vrot.lane.b32.xlu0 %v681, 32
  %v684 = vpop.permute.xlu0 %683
  %v686 = vadd.f32 %v676, %v684
  %v687 = vtanh.pop %v686
  %689 = vrot.lane.b32.xlu0 %v687, 64
  %v690 = vpop.permute.xlu0 %689
  %v692 = vmul.f32 %v674, %v690
  %694 = vrot.lane.b32.xlu0 %v692, 32
  %v695 = vpop.permute.xlu0 %694
  %697 = vst.msk [vmem:[#allocation2 + $0x20] sm:$0xff] %vm186, %v695
  %v698 = vsel %vm186, %v695, 0
  %700 = vmatprep.subr.mxu0 0.0
  %701 = vmatpush1.msra.mxu0 0.0
  %702 = vmatprep.subr.mxu0 0.0
  %703 = vmatpush1.msra.mxu0 0.0
  %704 = vmatprep.subr.mxu0 0.0
  %705 = vmatpush1.msra.mxu0 0.0
  %706 = vmatprep.subr.mxu0 0.0
  %707 = vmatpush1.msra.mxu0 0.0
  %708 = vmatprep.subr.mxu0 0.0
  %709 = vmatpush1.msra.mxu0 0.0
  %710 = vmatprep.subr.mxu0 0.0
  %711 = vmatpush1.msra.mxu0 0.0
  %712 = vmatprep.subr.mxu0 0.0
  %713 = vmatpush1.msra.mxu0 0.0
  %714 = vmatprep.subr.mxu0 0.0
  %715 = vmatpush1.msra.mxu0 0.0
  %716 = vmatprep.subr.mxu0 0.0
  %717 = vmatpush1.msra.mxu0 0.0
  %718 = vmatprep.subr.mxu0 0.0
  %719 = vmatpush1.msra.mxu0 0.0
  %720 = vmatprep.subr.mxu0 0.0
  %721 = vmatpush1.msra.mxu0 0.0
  %722 = vmatprep.subr.mxu0 0.0
  %723 = vmatpush1.msra.mxu0 0.0
  %724 = vmatprep.subr.mxu0 0.0
  %725 = vmatpush1.msra.mxu0 %v32
  %726 = vmatprep.subr.mxu0 0.0
  %727 = vmatpush1.msra.mxu0 %v31
  %728 = vmatprep.subr.mxu0 0.0
  %729 = vmatpush1.msra.mxu0 %v30
  %730 = vmatprep.subr.mxu0 0.0
  %731 = vmatpush1.msra.mxu0 %v29
  %732 = vmatprep.subr.mxu0 0.0
  %733 = vmatpush2.msra.mxu0 0.0
  %734 = vmatprep.subr.mxu0 0.0
  %735 = vmatpush2.msra.mxu0 0.0
  %736 = vmatprep.subr.mxu0 0.0
  %737 = vmatpush2.msra.mxu0 0.0
  %738 = vmatprep.subr.mxu0 0.0
  %739 = vmatpush2.msra.mxu0 0.0
  %740 = vmatprep.subr.mxu0 0.0
  %741 = vmatpush2.msra.mxu0 0.0
  %742 = vmatprep.subr.mxu0 0.0
  %743 = vmatpush2.msra.mxu0 0.0
  %744 = vmatprep.subr.mxu0 0.0
  %745 = vmatpush2.msra.mxu0 0.0
  %746 = vmatprep.subr.mxu0 0.0
  %747 = vmatpush2.msra.mxu0 0.0
  %748 = vmatprep.subr.mxu0 0.0
  %749 = vmatpush2.msra.mxu0 0.0
  %750 = vmatprep.subr.mxu0 0.0
  %751 = vmatpush2.msra.mxu0 0.0
  %752 = vmatprep.subr.mxu0 0.0
  %753 = vmatpush2.msra.mxu0 0.0
  %754 = vmatprep.subr.mxu0 0.0
  %755 = vmatpush2.msra.mxu0 0.0
  %756 = vmatprep.subr.mxu0 0.0
  %757 = vmatpush2.msra.mxu0 0.0
  %758 = vmatprep.subr.mxu0 0.0
  %759 = vmatpush2.msra.mxu0 0.0
  %760 = vmatprep.subr.mxu0 0.0
  %761 = vmatpush2.msra.mxu0 0.0
  %762 = vmatprep.subr.mxu0 0.0
  %763 = vmatpush2.msra.mxu0 0.0
  %764 = vmatprep.mubr.f32.mxu0 0.0
  %765 = vmatmul.mubr.f32.gmra.mxu0 %v698
  %v766 = vpop.f32.mrf.mxu0
  %v767 = vadd.f32 0.0, %v766
  %v768 = vpop.f32.mrf.mxu0
  %769 = vdwg.mxu0
  %v770 = vadd.f32 %v173, %v767
  %v771 = vxor.u32 %v770, 2147483648
  %v772 = vmul.f32 %v771, 1.442695
  %v773 = vpow.pop %v772
  %v774 = vadd.f32 %v773, 1.0
  %v775 = vrcp.pop %v774
  %v776 = vmul.f32 1.0, %v775
  %v777 = vtanh.pop %v770
  %v778 = vmul.f32 %v776, %v686
  %780 = vrot.lane.b32.xlu0 %v777, 64
  %v781 = vpop.permute.xlu0 %780
  %v783 = vmul.f32 %v776, %v781
  %785 = vrot.lane.b32.xlu0 %v783, 32
  %v786 = vpop.permute.xlu0 %785
  %v788 = vadd.f32 %v778, %v786
  %v789 = vtanh.pop %v788
  %791 = vrot.lane.b32.xlu0 %v789, 64
  %v792 = vpop.permute.xlu0 %791
  %v794 = vmul.f32 %v776, %v792
  %796 = vrot.lane.b32.xlu0 %v794, 32
  %v797 = vpop.permute.xlu0 %796
  %799 = vst.msk [vmem:[#allocation2 + $0x28] sm:$0xff] %vm186, %v797
  %v800 = vsel %vm186, %v797, 0
  %802 = vmatprep.subr.mxu0 0.0
  %803 = vmatpush1.msra.mxu0 0.0
  %804 = vmatprep.subr.mxu0 0.0
  %805 = vmatpush1.msra.mxu0 0.0
  %806 = vmatprep.subr.mxu0 0.0
  %807 = vmatpush1.msra.mxu0 0.0
  %808 = vmatprep.subr.mxu0 0.0
  %809 = vmatpush1.msra.mxu0 0.0
  %810 = vmatprep.subr.mxu0 0.0
  %811 = vmatpush1.msra.mxu0 0.0
  %812 = vmatprep.subr.mxu0 0.0
  %813 = vmatpush1.msra.mxu0 0.0
  %814 = vmatprep.subr.mxu0 0.0
  %815 = vmatpush1.msra.mxu0 0.0
  %816 = vmatprep.subr.mxu0 0.0
  %817 = vmatpush1.msra.mxu0 0.0
  %818 = vmatprep.subr.mxu0 0.0
  %819 = vmatpush1.msra.mxu0 0.0
  %820 = vmatprep.subr.mxu0 0.0
  %821 = vmatpush1.msra.mxu0 0.0
  %822 = vmatprep.subr.mxu0 0.0
  %823 = vmatpush1.msra.mxu0 0.0
  %824 = vmatprep.subr.mxu0 0.0
  %825 = vmatpush1.msra.mxu0 0.0
  %826 = vmatprep.subr.mxu0 0.0
  %827 = vmatpush1.msra.mxu0 %v32
  %828 = vmatprep.subr.mxu0 0.0
  %829 = vmatpush1.msra.mxu0 %v31
  %830 = vmatprep.subr.mxu0 0.0
  %831 = vmatpush1.msra.mxu0 %v30
  %832 = vmatprep.subr.mxu0 0.0
  %833 = vmatpush1.msra.mxu0 %v29
  %834 = vmatprep.subr.mxu0 0.0
  %835 = vmatpush2.msra.mxu0 0.0
  %836 = vmatprep.subr.mxu0 0.0
  %837 = vmatpush2.msra.mxu0 0.0
  %838 = vmatprep.subr.mxu0 0.0
  %839 = vmatpush2.msra.mxu0 0.0
  %840 = vmatprep.subr.mxu0 0.0
  %841 = vmatpush2.msra.mxu0 0.0
  %842 = vmatprep.subr.mxu0 0.0
  %843 = vmatpush2.msra.mxu0 0.0
  %844 = vmatprep.subr.mxu0 0.0
  %845 = vmatpush2.msra.mxu0 0.0
  %846 = vmatprep.subr.mxu0 0.0
  %847 = vmatpush2.msra.mxu0 0.0
  %848 = vmatprep.subr.mxu0 0.0
  %849 = vmatpush2.msra.mxu0 0.0
  %850 = vmatprep.subr.mxu0 0.0
  %851 = vmatpush2.msra.mxu0 0.0
  %852 = vmatprep.subr.mxu0 0.0
  %853 = vmatpush2.msra.mxu0 0.0
  %854 = vmatprep.subr.mxu0 0.0
  %855 = vmatpush2.msra.mxu0 0.0
  %856 = vmatprep.subr.mxu0 0.0
  %857 = vmatpush2.msra.mxu0 0.0
  %858 = vmatprep.subr.mxu0 0.0
  %859 = vmatpush2.msra.mxu0 0.0
  %860 = vmatprep.subr.mxu0 0.0
  %861 = vmatpush2.msra.mxu0 0.0
  %862 = vmatprep.subr.mxu0 0.0
  %863 = vmatpush2.msra.mxu0 0.0
  %864 = vmatprep.subr.mxu0 0.0
  %865 = vmatpush2.msra.mxu0 0.0
  %866 = vmatprep.mubr.f32.mxu0 0.0
  %867 = vmatmul.mubr.f32.gmra.mxu0 %v800
  %v868 = vpop.f32.mrf.mxu0
  %v869 = vadd.f32 0.0, %v868
  %v870 = vpop.f32.mrf.mxu0
  %871 = vdwg.mxu0
  %v872 = vadd.f32 %v178, %v869
  %v873 = vxor.u32 %v872, 2147483648
  %v874 = vmul.f32 %v873, 1.442695
  %v875 = vpow.pop %v874
  %v876 = vadd.f32 %v875, 1.0
  %v877 = vrcp.pop %v876
  %v878 = vmul.f32 1.0, %v877
  %v879 = vtanh.pop %v872
  %v880 = vmul.f32 %v878, %v788
  %882 = vrot.lane.b32.xlu0 %v879, 64
  %v883 = vpop.permute.xlu0 %882
  %v885 = vmul.f32 %v878, %v883
  %887 = vrot.lane.b32.xlu0 %v885, 32
  %v888 = vpop.permute.xlu0 %887
  %v890 = vadd.f32 %v880, %v888
  %v891 = vtanh.pop %v890
  %893 = vrot.lane.b32.xlu0 %v891, 64
  %v894 = vpop.permute.xlu0 %893
  %v896 = vmul.f32 %v878, %v894
  %898 = vrot.lane.b32.xlu0 %v896, 32
  %v899 = vpop.permute.xlu0 %898
  %901 = vst.msk [vmem:[#allocation2 + $0x30] sm:$0xff] %vm186, %v899
  %v902 = vsel %vm186, %v899, 0
  %904 = vmatprep.subr.mxu0 0.0
  %905 = vmatpush1.msra.mxu0 0.0
  %906 = vmatprep.subr.mxu0 0.0
  %907 = vmatpush1.msra.mxu0 0.0
  %908 = vmatprep.subr.mxu0 0.0
  %909 = vmatpush1.msra.mxu0 0.0
  %910 = vmatprep.subr.mxu0 0.0
  %911 = vmatpush1.msra.mxu0 0.0
  %912 = vmatprep.subr.mxu0 0.0
  %913 = vmatpush1.msra.mxu0 0.0
  %914 = vmatprep.subr.mxu0 0.0
  %915 = vmatpush1.msra.mxu0 0.0
  %916 = vmatprep.subr.mxu0 0.0
  %917 = vmatpush1.msra.mxu0 0.0
  %918 = vmatprep.subr.mxu0 0.0
  %919 = vmatpush1.msra.mxu0 0.0
  %920 = vmatprep.subr.mxu0 0.0
  %921 = vmatpush1.msra.mxu0 0.0
  %922 = vmatprep.subr.mxu0 0.0
  %923 = vmatpush1.msra.mxu0 0.0
  %924 = vmatprep.subr.mxu0 0.0
  %925 = vmatpush1.msra.mxu0 0.0
  %926 = vmatprep.subr.mxu0 0.0
  %927 = vmatpush1.msra.mxu0 0.0
  %928 = vmatprep.subr.mxu0 0.0
  %929 = vmatpush1.msra.mxu0 %v32
  %930 = vmatprep.subr.mxu0 0.0
  %931 = vmatpush1.msra.mxu0 %v31
  %932 = vmatprep.subr.mxu0 0.0
  %933 = vmatpush1.msra.mxu0 %v30
  %934 = vmatprep.subr.mxu0 0.0
  %935 = vmatpush1.msra.mxu0 %v29
  %936 = vmatprep.subr.mxu0 0.0
  %937 = vmatpush2.msra.mxu0 0.0
  %938 = vmatprep.subr.mxu0 0.0
  %939 = vmatpush2.msra.mxu0 0.0
  %940 = vmatprep.subr.mxu0 0.0
  %941 = vmatpush2.msra.mxu0 0.0
  %942 = vmatprep.subr.mxu0 0.0
  %943 = vmatpush2.msra.mxu0 0.0
  %944 = vmatprep.subr.mxu0 0.0
  %945 = vmatpush2.msra.mxu0 0.0
  %946 = vmatprep.subr.mxu0 0.0
  %947 = vmatpush2.msra.mxu0 0.0
  %948 = vmatprep.subr.mxu0 0.0
  %949 = vmatpush2.msra.mxu0 0.0
  %950 = vmatprep.subr.mxu0 0.0
  %951 = vmatpush2.msra.mxu0 0.0
  %952 = vmatprep.subr.mxu0 0.0
  %953 = vmatpush2.msra.mxu0 0.0
  %954 = vmatprep.subr.mxu0 0.0
  %955 = vmatpush2.msra.mxu0 0.0
  %956 = vmatprep.subr.mxu0 0.0
  %957 = vmatpush2.msra.mxu0 0.0
  %958 = vmatprep.subr.mxu0 0.0
  %959 = vmatpush2.msra.mxu0 0.0
  %960 = vmatprep.subr.mxu0 0.0
  %961 = vmatpush2.msra.mxu0 0.0
  %962 = vmatprep.subr.mxu0 0.0
  %963 = vmatpush2.msra.mxu0 0.0
  %964 = vmatprep.subr.mxu0 0.0
  %965 = vmatpush2.msra.mxu0 0.0
  %966 = vmatprep.subr.mxu0 0.0
  %967 = vmatpush2.msra.mxu0 0.0
  %968 = vmatprep.mubr.f32.mxu0 0.0
  %969 = vmatmul.mubr.f32.gmra.mxu0 %v902
  %v970 = vpop.f32.mrf.mxu0
  %v971 = vadd.f32 0.0, %v970
  %v972 = vpop.f32.mrf.mxu0
  %973 = vdwg.mxu0
  %v974 = vadd.f32 %v183, %v971
  %v975 = vxor.u32 %v974, 2147483648
  %v976 = vmul.f32 %v975, 1.442695
  %v977 = vpow.pop %v976
  %v978 = vadd.f32 %v977, 1.0
  %v979 = vrcp.pop %v978
  %v980 = vmul.f32 1.0, %v979
  %v981 = vtanh.pop %v974
  %v982 = vmul.f32 %v980, %v890
  %984 = vrot.lane.b32.xlu0 %v981, 64
  %v985 = vpop.permute.xlu0 %984
  %v987 = vmul.f32 %v980, %v985
  %989 = vrot.lane.b32.xlu0 %v987, 32
  %v990 = vpop.permute.xlu0 %989
  %v992 = vadd.f32 %v982, %v990
  %v993 = vtanh.pop %v992
  %995 = vrot.lane.b32.xlu0 %v993, 64
  %v996 = vpop.permute.xlu0 %995
  %v998 = vmul.f32 %v980, %v996
  %1000 = vrot.lane.b32.xlu0 %v998, 32
  %v1001 = vpop.permute.xlu0 %1000
  %1003 = vst.msk [vmem:[#allocation2 + $0x38] sm:$0xff] %vm186, %v1001
  %v1004 = vld [vmem:[#allocation2] sm:$0xff]
  %v1005 = vld [vmem:[#allocation2 + $0x8] sm:$0xff]
  %v1006 = vld [vmem:[#allocation2 + $0x10] sm:$0xff]
  %v1007 = vld [vmem:[#allocation2 + $0x18] sm:$0xff]
  %v1008 = vld [vmem:[#allocation2 + $0x20] sm:$0xff]
  %v1009 = vld [vmem:[#allocation2 + $0x28] sm:$0xff]
  %v1010 = vld [vmem:[#allocation2 + $0x30] sm:$0xff]
  %v1011 = vld [vmem:[#allocation2 + $0x38] sm:$0xff]
  %v1012 = vld [vmem:[%s4] sm:$0xff]
  %v1013 = vld [vmem:[%s4 + $0x8] sm:$0xff]
  %v1014 = vld [vmem:[%s4 + $0x10] sm:$0xff]
  %v1015 = vld [vmem:[%s4 + $0x18] sm:$0xff]
  %v1016 = vld [vmem:[%s5] sm:$0x1]
  %v1018 = vlaneseq
  %v1019 = vshrl.u32 %v1018, 7
  %v1020 = vsub.s32 0, %v1019
  %v1021 = vrot.slane %v1016, %v1020
  %v1024 = vsel %vm186, %v1004, 0
  %v1027 = vsel %vm186, %v1005, 0
  %v1030 = vsel %vm186, %v1006, 0
  %v1033 = vsel %vm186, %v1007, 0
  %v1036 = vsel %vm186, %v1008, 0
  %v1039 = vsel %vm186, %v1009, 0
  %v1042 = vsel %vm186, %v1010, 0
  %v1045 = vsel %vm186, %v1011, 0
  %1047 = vmatprep.subr.mxu0 0.0
  %1048 = vmatpush1.msra.mxu0 0.0
  %1049 = vmatprep.subr.mxu0 0.0
  %1050 = vmatpush1.msra.mxu0 0.0
  %1051 = vmatprep.subr.mxu0 0.0
  %1052 = vmatpush1.msra.mxu0 0.0
  %1053 = vmatprep.subr.mxu0 0.0
  %1054 = vmatpush1.msra.mxu0 0.0
  %1055 = vmatprep.subr.mxu0 0.0
  %1056 = vmatpush1.msra.mxu0 0.0
  %1057 = vmatprep.subr.mxu0 0.0
  %1058 = vmatpush1.msra.mxu0 0.0
  %1059 = vmatprep.subr.mxu0 0.0
  %1060 = vmatpush1.msra.mxu0 0.0
  %1061 = vmatprep.subr.mxu0 0.0
  %1062 = vmatpush1.msra.mxu0 0.0
  %1063 = vmatprep.subr.mxu0 0.0
  %1064 = vmatpush1.msra.mxu0 0.0
  %1065 = vmatprep.subr.mxu0 0.0
  %1066 = vmatpush1.msra.mxu0 0.0
  %1067 = vmatprep.subr.mxu0 0.0
  %1068 = vmatpush1.msra.mxu0 0.0
  %1069 = vmatprep.subr.mxu0 0.0
  %1070 = vmatpush1.msra.mxu0 0.0
  %1071 = vmatprep.subr.mxu0 0.0
  %1072 = vmatpush1.msra.mxu0 %v1015
  %1073 = vmatprep.subr.mxu0 0.0
  %1074 = vmatpush1.msra.mxu0 %v1014
  %1075 = vmatprep.subr.mxu0 0.0
  %1076 = vmatpush1.msra.mxu0 %v1013
  %1077 = vmatprep.subr.mxu0 0.0
  %1078 = vmatpush1.msra.mxu0 %v1012
  %1079 = vmatprep.subr.mxu0 0.0
  %1080 = vmatpush2.msra.mxu0 0.0
  %1081 = vmatprep.subr.mxu0 0.0
  %1082 = vmatpush2.msra.mxu0 0.0
  %1083 = vmatprep.subr.mxu0 0.0
  %1084 = vmatpush2.msra.mxu0 0.0
  %1085 = vmatprep.subr.mxu0 0.0
  %1086 = vmatpush2.msra.mxu0 0.0
  %1087 = vmatprep.subr.mxu0 0.0
  %1088 = vmatpush2.msra.mxu0 0.0
  %1089 = vmatprep.subr.mxu0 0.0
  %1090 = vmatpush2.msra.mxu0 0.0
  %1091 = vmatprep.subr.mxu0 0.0
  %1092 = vmatpush2.msra.mxu0 0.0
  %1093 = vmatprep.subr.mxu0 0.0
  %1094 = vmatpush2.msra.mxu0 0.0
  %1095 = vmatprep.subr.mxu0 0.0
  %1096 = vmatpush2.msra.mxu0 0.0
  %1097 = vmatprep.subr.mxu0 0.0
  %1098 = vmatpush2.msra.mxu0 0.0
  %1099 = vmatprep.subr.mxu0 0.0
  %1100 = vmatpush2.msra.mxu0 0.0
  %1101 = vmatprep.subr.mxu0 0.0
  %1102 = vmatpush2.msra.mxu0 0.0
  %1103 = vmatprep.subr.mxu0 0.0
  %1104 = vmatpush2.msra.mxu0 0.0
  %1105 = vmatprep.subr.mxu0 0.0
  %1106 = vmatpush2.msra.mxu0 0.0
  %1107 = vmatprep.subr.mxu0 0.0
  %1108 = vmatpush2.msra.mxu0 0.0
  %1109 = vmatprep.subr.mxu0 0.0
  %1110 = vmatpush2.msra.mxu0 0.0
  %1111 = vmatprep.mubr.f32.mxu0 0.0
  %1112 = vmatmul.mubr.f32.gmra.mxu0 %v1024
  %v1113 = vpop.f32.mrf.mxu0
  %v1114 = vadd.f32 %v1021, %v1113
  %v1115 = vpop.f32.mrf.mxu0
  %1116 = vmatprep.mubr.f32.mxu0 0.0
  %1117 = vmatmul.mubr.f32.gmra.mxu0 %v1027
  %v1118 = vpop.f32.mrf.mxu0
  %v1119 = vadd.f32 %v1021, %v1118
  %v1120 = vpop.f32.mrf.mxu0
  %1121 = vmatprep.mubr.f32.mxu0 0.0
  %1122 = vmatmul.mubr.f32.gmra.mxu0 %v1030
  %v1123 = vpop.f32.mrf.mxu0
  %v1124 = vadd.f32 %v1021, %v1123
  %v1125 = vpop.f32.mrf.mxu0
  %1126 = vmatprep.mubr.f32.mxu0 0.0
  %1127 = vmatmul.mubr.f32.gmra.mxu0 %v1033
  %v1128 = vpop.f32.mrf.mxu0
  %v1129 = vadd.f32 %v1021, %v1128
  %v1130 = vpop.f32.mrf.mxu0
  %1131 = vmatprep.mubr.f32.mxu0 0.0
  %1132 = vmatmul.mubr.f32.gmra.mxu0 %v1036
  %v1133 = vpop.f32.mrf.mxu0
  %v1134 = vadd.f32 %v1021, %v1133
  %v1135 = vpop.f32.mrf.mxu0
  %1136 = vmatprep.mubr.f32.mxu0 0.0
  %1137 = vmatmul.mubr.f32.gmra.mxu0 %v1039
  %v1138 = vpop.f32.mrf.mxu0
  %v1139 = vadd.f32 %v1021, %v1138
  %v1140 = vpop.f32.mrf.mxu0
  %1141 = vmatprep.mubr.f32.mxu0 0.0
  %1142 = vmatmul.mubr.f32.gmra.mxu0 %v1042
  %v1143 = vpop.f32.mrf.mxu0
  %v1144 = vadd.f32 %v1021, %v1143
  %v1145 = vpop.f32.mrf.mxu0
  %1146 = vmatprep.mubr.f32.mxu0 0.0
  %1147 = vmatmul.mubr.f32.gmra.mxu0 %v1045
  %v1148 = vpop.f32.mrf.mxu0
  %v1149 = vadd.f32 %v1021, %v1148
  %v1150 = vpop.f32.mrf.mxu0
  %1151 = vdwg.mxu0
  %v1152 = vmax.f32 %v1114, 0.0
  %v1153 = vmax.f32 %v1119, 0.0
  %v1154 = vmax.f32 %v1124, 0.0
  %v1155 = vmax.f32 %v1129, 0.0
  %v1156 = vmax.f32 %v1134, 0.0
  %v1157 = vmax.f32 %v1139, 0.0
  %v1158 = vmax.f32 %v1144, 0.0
  %v1159 = vmax.f32 %v1149, 0.0
  %v1160 = vld [vmem:[%s6] sm:$0xff]
  %v1161 = vld [vmem:[%s6 + $0x8] sm:$0xff]
  %v1162 = vld [vmem:[%s6 + $0x10] sm:$0xff]
  %v1163 = vld [vmem:[%s6 + $0x18] sm:$0xff]
  %v1164 = vld [vmem:[%s6 + $0x20] sm:$0xff]
  %v1165 = vld [vmem:[%s6 + $0x28] sm:$0xff]
  %v1166 = vld [vmem:[%s6 + $0x30] sm:$0xff]
  %v1167 = vld [vmem:[%s6 + $0x38] sm:$0xff]
  %v1168 = vld [vmem:[%s7] sm:$0x1]
  %v1170 = vlaneseq
  %v1171 = vshrl.u32 %v1170, 7
  %v1172 = vsub.s32 0, %v1171
  %v1173 = vrot.slane %v1168, %v1172
  %v1176 = vsel %vm56, %v1152, 0
  %v1179 = vsel %vm56, %v1153, 0
  %v1182 = vsel %vm56, %v1154, 0
  %v1185 = vsel %vm56, %v1155, 0
  %v1188 = vsel %vm56, %v1156, 0
  %v1191 = vsel %vm56, %v1157, 0
  %v1194 = vsel %vm56, %v1158, 0
  %v1197 = vsel %vm56, %v1159, 0
  %1199 = vmatprep.subr.mxu0 0.0
  %1200 = vmatpush1.msra.mxu0 0.0
  %1201 = vmatprep.subr.mxu0 0.0
  %1202 = vmatpush1.msra.mxu0 0.0
  %1203 = vmatprep.subr.mxu0 0.0
  %1204 = vmatpush1.msra.mxu0 0.0
  %1205 = vmatprep.subr.mxu0 0.0
  %1206 = vmatpush1.msra.mxu0 0.0
  %1207 = vmatprep.subr.mxu0 0.0
  %1208 = vmatpush1.msra.mxu0 0.0
  %1209 = vmatprep.subr.mxu0 0.0
  %1210 = vmatpush1.msra.mxu0 0.0
  %1211 = vmatprep.subr.mxu0 0.0
  %1212 = vmatpush1.msra.mxu0 0.0
  %1213 = vmatprep.subr.mxu0 0.0
  %1214 = vmatpush1.msra.mxu0 0.0
  %1215 = vmatprep.subr.mxu0 0.0
  %1216 = vmatpush1.msra.mxu0 %v1167
  %1217 = vmatprep.subr.mxu0 0.0
  %1218 = vmatpush1.msra.mxu0 %v1166
  %1219 = vmatprep.subr.mxu0 0.0
  %1220 = vmatpush1.msra.mxu0 %v1165
  %1221 = vmatprep.subr.mxu0 0.0
  %1222 = vmatpush1.msra.mxu0 %v1164
  %1223 = vmatprep.subr.mxu0 0.0
  %1224 = vmatpush1.msra.mxu0 %v1163
  %1225 = vmatprep.subr.mxu0 0.0
  %1226 = vmatpush1.msra.mxu0 %v1162
  %1227 = vmatprep.subr.mxu0 0.0
  %1228 = vmatpush1.msra.mxu0 %v1161
  %1229 = vmatprep.subr.mxu0 0.0
  %1230 = vmatpush1.msra.mxu0 %v1160
  %1231 = vmatprep.subr.mxu0 0.0
  %1232 = vmatpush2.msra.mxu0 0.0
  %1233 = vmatprep.subr.mxu0 0.0
  %1234 = vmatpush2.msra.mxu0 0.0
  %1235 = vmatprep.subr.mxu0 0.0
  %1236 = vmatpush2.msra.mxu0 0.0
  %1237 = vmatprep.subr.mxu0 0.0
  %1238 = vmatpush2.msra.mxu0 0.0
  %1239 = vmatprep.subr.mxu0 0.0
  %1240 = vmatpush2.msra.mxu0 0.0
  %1241 = vmatprep.subr.mxu0 0.0
  %1242 = vmatpush2.msra.mxu0 0.0
  %1243 = vmatprep.subr.mxu0 0.0
  %1244 = vmatpush2.msra.mxu0 0.0
  %1245 = vmatprep.subr.mxu0 0.0
  %1246 = vmatpush2.msra.mxu0 0.0
  %1247 = vmatprep.subr.mxu0 0.0
  %1248 = vmatpush2.msra.mxu0 0.0
  %1249 = vmatprep.subr.mxu0 0.0
  %1250 = vmatpush2.msra.mxu0 0.0
  %1251 = vmatprep.subr.mxu0 0.0
  %1252 = vmatpush2.msra.mxu0 0.0
  %1253 = vmatprep.subr.mxu0 0.0
  %1254 = vmatpush2.msra.mxu0 0.0
  %1255 = vmatprep.subr.mxu0 0.0
  %1256 = vmatpush2.msra.mxu0 0.0
  %1257 = vmatprep.subr.mxu0 0.0
  %1258 = vmatpush2.msra.mxu0 0.0
  %1259 = vmatprep.subr.mxu0 0.0
  %1260 = vmatpush2.msra.mxu0 0.0
  %1261 = vmatprep.subr.mxu0 0.0
  %1262 = vmatpush2.msra.mxu0 0.0
  %1263 = vmatprep.mubr.f32.mxu0 0.0
  %1264 = vmatmul.mubr.f32.gmra.mxu0 %v1176
  %v1265 = vpop.f32.mrf.mxu0
  %v1266 = vadd.f32 %v1173, %v1265
  %v1267 = vpop.f32.mrf.mxu0
  %1268 = vmatprep.mubr.f32.mxu0 0.0
  %1269 = vmatmul.mubr.f32.gmra.mxu0 %v1179
  %v1270 = vpop.f32.mrf.mxu0
  %v1271 = vadd.f32 %v1173, %v1270
  %v1272 = vpop.f32.mrf.mxu0
  %1273 = vmatprep.mubr.f32.mxu0 0.0
  %1274 = vmatmul.mubr.f32.gmra.mxu0 %v1182
  %v1275 = vpop.f32.mrf.mxu0
  %v1276 = vadd.f32 %v1173, %v1275
  %v1277 = vpop.f32.mrf.mxu0
  %1278 = vmatprep.mubr.f32.mxu0 0.0
  %1279 = vmatmul.mubr.f32.gmra.mxu0 %v1185
  %v1280 = vpop.f32.mrf.mxu0
  %v1281 = vadd.f32 %v1173, %v1280
  %v1282 = vpop.f32.mrf.mxu0
  %1283 = vmatprep.mubr.f32.mxu0 0.0
  %1284 = vmatmul.mubr.f32.gmra.mxu0 %v1188
  %v1285 = vpop.f32.mrf.mxu0
  %v1286 = vadd.f32 %v1173, %v1285
  %v1287 = vpop.f32.mrf.mxu0
  %1288 = vmatprep.mubr.f32.mxu0 0.0
  %1289 = vmatmul.mubr.f32.gmra.mxu0 %v1191
  %v1290 = vpop.f32.mrf.mxu0
  %v1291 = vadd.f32 %v1173, %v1290
  %v1292 = vpop.f32.mrf.mxu0
  %1293 = vmatprep.mubr.f32.mxu0 0.0
  %1294 = vmatmul.mubr.f32.gmra.mxu0 %v1194
  %v1295 = vpop.f32.mrf.mxu0
  %v1296 = vadd.f32 %v1173, %v1295
  %v1297 = vpop.f32.mrf.mxu0
  %1298 = vmatprep.mubr.f32.mxu0 0.0
  %1299 = vmatmul.mubr.f32.gmra.mxu0 %v1197
  %v1300 = vpop.f32.mrf.mxu0
  %v1301 = vadd.f32 %v1173, %v1300
  %v1302 = vpop.f32.mrf.mxu0
  %1303 = vdwg.mxu0
  %1304 = vst [vmem:[%s8] sm:$0xff] %v1266
  %1305 = vst [vmem:[%s8 + $0x8] sm:$0xff] %v1271
  %1306 = vst [vmem:[%s8 + $0x10] sm:$0xff] %v1276
  %1307 = vst [vmem:[%s8 + $0x18] sm:$0xff] %v1281
  %1308 = vst [vmem:[%s8 + $0x20] sm:$0xff] %v1286
  %1309 = vst [vmem:[%s8 + $0x28] sm:$0xff] %v1291
  %1310 = vst [vmem:[%s8 + $0x30] sm:$0xff] %v1296
  %1311 = vst [vmem:[%s8 + $0x38] sm:$0xff] %v1301
  // Predicated region
  $region34: #{encoder_forward.1} parent=0 // pred_check
    _
  $region35: #{encoder_forward.1} parent=0 // pred_check_branch
    %1313 = sbr.rel (0) target = $region37
  $region36: #{encoder_forward.1} parent=0 // pred_region
    _
  $region37: #{encoder_forward.1} parent=0 // pred_fallthru
    _
  // Predicated region
  $region38: #{encoder_forward.1} parent=0 // pred_check
    _
  $region39: #{encoder_forward.1} parent=0 // pred_check_branch
    %1315 = sbr.rel (0) target = $region41
  $region40: #{encoder_forward.1} parent=0 // pred_region
    _
  $region41: #{encoder_forward.1} parent=0 // pred_fallthru
    _

</llo_original>
